<compile_context>
chip_gen: v6e
topology: v6e:2x2x1
jax: 0.10.0
libtpu: 0.0.40
codegen_flags: <defaults>
</compile_context>

<pallas_src>
import functools

import jax
import jax.numpy as jnp
from jax.experimental import pallas as pl
from jax.experimental.pallas import tpu as pltpu


F_PAD = 128     # lane-dense padding for skinny feature dims (5 -> 128, 100 -> 128)
W_MAX = 256     # common lane width of the packed weight / bias slabs
B_PAD = 8       # sublane padding of the batch (pool / fc / output) dimension

# (rows, cols) of each weight block inside the packed slab, in order:
#   conv1, conv2, conv3, conv4, fc1, fc2   (rows/cols already padded)
_W_SHAPES = ((F_PAD, 32), (32, 64), (64, 128), (128, 256),
             (256, F_PAD), (F_PAD, F_PAD))
_W_OFFSETS = []
_off = 0
for _fi, _fo in _W_SHAPES:
    _W_OFFSETS.append(_off)
    _off += _fi
_W_SLAB_ROWS = _off            # 736 (every offset is a multiple of 16 -> bf16 tile aligned)


# ----------------------------- fused Pallas kernel ---------------------------


def _fused_net_kernel(num_classes, a_ref, x_ref, p_ref, w_ref, b_ref, o_ref):
    a = a_ref[...]                      # [N, N]    bf16
    h = x_ref[...]                      # [N, 128]  bf16 (F_in padded 5 -> 128)

    def gcn_relu(h_bf16, layer):
        fi, fo = _W_SHAPES[layer]
        off = _W_OFFSETS[layer]
        # X @ W (MXU bf16, f32 acc), A_hat @ (XW) (MXU), bias + relu in f32.
        w = w_ref[off:off + fi, 0:fo]                                   # bf16
        xw = jnp.dot(h_bf16, w, preferred_element_type=jnp.float32)
        agg = jnp.dot(a, xw.astype(jnp.bfloat16),
                      preferred_element_type=jnp.float32)
        b = b_ref[layer:layer + 1, 0:fo]                                # f32
        return jnp.maximum(agg + b, 0.0)                                # f32 (VPU)

    h = gcn_relu(h, 0).astype(jnp.bfloat16)     # [N, 32]
    h = gcn_relu(h, 1).astype(jnp.bfloat16)     # [N, 64]
    h = gcn_relu(h, 2).astype(jnp.bfloat16)     # [N, 128]
    h = gcn_relu(h, 3).astype(jnp.bfloat16)     # [N, 256]

    # global mean pool: P already carries 1/count weights (padded to 8 rows).
    pooled = jnp.dot(p_ref[...], h, preferred_element_type=jnp.float32)  # [8, 256]

    # fc1 + relu (hidden padded 100 -> 128; padded cols have zero weights/bias)
    fi1, fo1 = _W_SHAPES[4]
    off1 = _W_OFFSETS[4]
    h1 = jnp.maximum(
        jnp.dot(pooled.astype(jnp.bfloat16), w_ref[off1:off1 + fi1, 0:fo1],
                preferred_element_type=jnp.float32) + b_ref[4:5, 0:fo1], 0.0)

    # fc2 into a 128-wide padded logits block
    fi2, fo2 = _W_SHAPES[5]
    off2 = _W_OFFSETS[5]
    logits = (jnp.dot(h1.astype(jnp.bfloat16), w_ref[off2:off2 + fi2, 0:fo2],
                      preferred_element_type=jnp.float32) + b_ref[5:6, 0:fo2])

    # mask padded classes so log_softmax only normalizes over true classes
    col = jax.lax.broadcasted_iota(jnp.int32, logits.shape, 1)
    logits = jnp.where(col < num_classes, logits, jnp.float32(-1e30))

    m = jnp.max(logits, axis=-1, keepdims=True)
    z = logits - m
    lse = jnp.log(jnp.sum(jnp.exp(z), axis=-1, keepdims=True))
    o_ref[...] = z - lse                                   # [8, 128] f32


# ------------------------------ Pallas wrapper --------------------------------


def _full_spec(shape):
    # whole-array block (block dims equal full array dims -> no (8,128) issue)
    return pl.BlockSpec(shape, lambda i: (0,) * len(shape))


def fused_net_forward(a_norm_bf16, x, pool_bf16, packed, num_classes):
    # per-call work: only pad + cast the tiny node-feature matrix.
    x_p = jnp.pad(x, ((0, 0), (0, F_PAD - x.shape[1]))).astype(jnp.bfloat16)

    inputs = (a_norm_bf16, x_p, pool_bf16, packed["w_slab"], packed["b_slab"])

    return pl.pallas_call(
        functools.partial(_fused_net_kernel, num_classes),
        grid=(1,),
        out_shape=jax.ShapeDtypeStruct((B_PAD, F_PAD), jnp.float32),
        in_specs=[_full_spec(v.shape) for v in inputs],
        out_specs=_full_spec((B_PAD, F_PAD)),
        compiler_params=pltpu.CompilerParams(
            dimension_semantics=("arbitrary",)),
    )(*inputs)


# ----------------------- one-time parameter packing ---------------------------


def pack_params(params):
    """Pad / cast / pack all weights and biases ONCE (hoisted out of forward)."""
    def pad2(m, rows, cols):
        return jnp.pad(m, ((0, rows - m.shape[0]), (0, cols - m.shape[1])))

    w_blocks = [
        pad2(params["conv1_w"], F_PAD, W_MAX),   # 5   -> 128 rows (matches padded X)
        pad2(params["conv2_w"], 32, W_MAX),
        pad2(params["conv3_w"], 64, W_MAX),
        pad2(params["conv4_w"], 128, W_MAX),
        pad2(params["fc1_w"], 256, W_MAX),       # 100 -> padded cols
        pad2(params["fc2_w"], F_PAD, W_MAX),     # 100 -> 128 rows, nc -> padded cols
    ]
    w_slab = jnp.concatenate(w_blocks, axis=0).astype(jnp.bfloat16)  # [736, 256]
    assert w_slab.shape == (_W_SLAB_ROWS, W_MAX)

    def pad1(v):
        return jnp.pad(v, (0, W_MAX - v.shape[0]))
    zero = jnp.zeros((W_MAX,), jnp.float32)
    b_slab = jnp.stack([pad1(params["conv1_b"]), pad1(params["conv2_b"]),
                        pad1(params["conv3_b"]), pad1(params["conv4_b"]),
                        pad1(params["fc1_b"]), pad1(params["fc2_b"]),
                        zero, zero], axis=0)                          # [8, 256] f32
    return {"w_slab": w_slab, "b_slab": b_slab}


# ------------------------------ glue (plain JAX) ------------------------------


def gcn_norm_dense(edge_index, num_nodes):
    """Dense D^{-1/2} (A + I) D^{-1/2} from a [2, E] COO edge index."""
    # NOTE: duplicate edges collapse to weight 1 (set, not scatter-add); fine
    # for this simple-graph setup.
    src, dst = edge_index[0], edge_index[1]
    adj = jnp.zeros((num_nodes, num_nodes), jnp.float32)
    adj = adj.at[src, dst].set(1.0)
    adj = adj + jnp.eye(num_nodes, dtype=jnp.float32)     # self-loops
    deg = jnp.sum(adj, axis=1)
    dinv = jnp.where(deg > 0, 1.0 / jnp.sqrt(deg), 0.0)
    return adj * dinv[:, None] * dinv[None, :]


def make_pool_matrix(batch, num_rows):
    onehot = (batch[None, :] == jnp.arange(num_rows)[:, None]).astype(jnp.float32)
    counts = jnp.maximum(jnp.sum(onehot, axis=1, keepdims=True), 1.0)
    return onehot / counts


def init_params(key, num_classes):
    dims = [(5, 32), (32, 64), (64, 128), (128, 256)]
    params = {}
    for i, (fi, fo) in enumerate(dims, start=1):
        key, k1 = jax.random.split(key)
        scale = jnp.sqrt(2.0 / (fi + fo))
        params[f"conv{i}_w"] = scale * jax.random.normal(k1, (fi, fo), jnp.float32)
        params[f"conv{i}_b"] = jnp.zeros((fo,), jnp.float32)
    key, k1, k2 = jax.random.split(key, 3)
    params["fc1_w"] = jnp.sqrt(2.0 / (256 + 100)) * jax.random.normal(
        k1, (256, 100), jnp.float32)
    params["fc1_b"] = jnp.zeros((100,), jnp.float32)
    params["fc2_w"] = jnp.sqrt(2.0 / (100 + num_classes)) * jax.random.normal(
        k2, (100, num_classes), jnp.float32)
    params["fc2_b"] = jnp.zeros((num_classes,), jnp.float32)
    return params


@functools.partial(jax.jit, static_argnames=("num_classes", "num_graphs"))
def net_forward(packed, x, a_norm, batch, num_classes, num_graphs):
    pool_mat = make_pool_matrix(batch, B_PAD).astype(jnp.bfloat16)   # [8, N]
    out = fused_net_forward(a_norm.astype(jnp.bfloat16), x, pool_mat,
                            packed, num_classes)
    return out[:num_graphs, :num_classes]


# ----------------------------------- main -------------------------------------


if __name__ == "__main__":
    key = jax.random.PRNGKey(0)

    num_classes = 4
    nodes_per_graph = 64
    num_graphs = 4
    n = nodes_per_graph * num_graphs                       # 256 nodes total

    # deterministic undirected graph: ring within each graph + a few chords
    src_list, dst_list = [], []
    for g in range(num_graphs):
        off = g * nodes_per_graph
        for i in range(nodes_per_graph):
            a, b = off + i, off + (i + 1) % nodes_per_graph
            src_list += [a, b]
            dst_list += [b, a]
        for i in range(0, nodes_per_graph, 4):             # chords
            a, b = off + i, off + (i + nodes_per_graph // 2) % nodes_per_graph
            src_list += [a, b]
            dst_list += [b, a]
    edge_index = jnp.array([src_list, dst_list], dtype=jnp.int32)   # [2, E]

    key, kx = jax.random.split(key)
    x = jax.random.normal(kx, (n, 5), jnp.float32)          # node features [N, 5]
    batch = jnp.repeat(jnp.arange(num_graphs, dtype=jnp.int32), nodes_per_graph)

    params = init_params(key, num_classes)
    packed = pack_params(params)                            # one-time pad/cast/pack
    a_norm = gcn_norm_dense(edge_index, n)

    out = net_forward(packed, x, a_norm, batch,
                      num_classes=num_classes, num_graphs=num_graphs)
    out = jax.block_until_ready(out)

    assert out.shape == (num_graphs, num_classes)
    # log_softmax rows should (approximately) exponentiate-sum to 1
    assert jnp.allclose(jnp.sum(jnp.exp(out), axis=-1), 1.0, atol=1e-4)
    assert jnp.all(jnp.isfinite(out))
    print("KERNEL_OK")
</pallas_src>

<mosaic_0001>
module attributes {stable_mosaic.version = 11 : i64} {
  func.func @_fused_net_kernel(%arg0: i32, %arg1: memref<256x256xbf16, #tpu.memory_space<vmem>>, %arg2: memref<256x128xbf16, #tpu.memory_space<vmem>>, %arg3: memref<8x256xbf16, #tpu.memory_space<vmem>>, %arg4: memref<736x256xbf16, #tpu.memory_space<vmem>>, %arg5: memref<8x256xf32, #tpu.memory_space<vmem>>, %arg6: memref<8x128xf32, #tpu.memory_space<vmem>>) attributes {dimension_semantics = [#tpu.dimension_semantics<arbitrary>], iteration_bounds = array<i64: 1>, scalar_prefetch = 0 : i64, scratch_operands = 0 : i64, tpu.core_type = #tpu.core_type<tc>, window_params = [{pipeline_mode = #tpu.pipeline_mode<synchronous>, transform_indices = @transform_0, window_bounds = array<i64: 256, 256>}, {pipeline_mode = #tpu.pipeline_mode<synchronous>, transform_indices = @transform_1, window_bounds = array<i64: 256, 128>}, {pipeline_mode = #tpu.pipeline_mode<synchronous>, transform_indices = @transform_2, window_bounds = array<i64: 8, 256>}, {pipeline_mode = #tpu.pipeline_mode<synchronous>, transform_indices = @transform_3, window_bounds = array<i64: 736, 256>}, {pipeline_mode = #tpu.pipeline_mode<synchronous>, transform_indices = @transform_4, window_bounds = array<i64: 8, 256>}, {pipeline_mode = #tpu.pipeline_mode<synchronous>, transform_indices = @transform_5, window_bounds = array<i64: 8, 128>}]} {
    %c0 = arith.constant 0 : index
    %c0_0 = arith.constant 0 : index
    %0 = vector.load %arg1[%c0, %c0_0] : memref<256x256xbf16, #tpu.memory_space<vmem>>, vector<256x256xbf16>
    %c0_1 = arith.constant 0 : index
    %c0_2 = arith.constant 0 : index
    %1 = vector.load %arg2[%c0_1, %c0_2] : memref<256x128xbf16, #tpu.memory_space<vmem>>, vector<256x128xbf16>
    %c0_3 = arith.constant 0 : index
    %c0_4 = arith.constant 0 : index
    %2 = vector.load %arg4[%c0_3, %c0_4] : memref<736x256xbf16, #tpu.memory_space<vmem>>, vector<128x32xbf16>
    %cst = arith.constant dense<0.000000e+00> : vector<256x32xf32>
    %3 = tpu.matmul %1, %2, %cst {dimension_numbers = #tpu.dot_dimension_numbers<[1], [0], [0], [1], [0, 0, 1, 1], [], []>} : vector<256x128xbf16>, vector<128x32xbf16>, vector<256x32xf32> -> vector<256x32xf32>
    %4 = arith.truncf %3 : vector<256x32xf32> to vector<256x32xbf16>
    %cst_5 = arith.constant dense<0.000000e+00> : vector<256x32xf32>
    %5 = tpu.matmul %0, %4, %cst_5 {dimension_numbers = #tpu.dot_dimension_numbers<[1], [0], [0], [1], [0, 0, 1, 1], [], []>} : vector<256x256xbf16>, vector<256x32xbf16>, vector<256x32xf32> -> vector<256x32xf32>
    %c0_6 = arith.constant 0 : index
    %c0_7 = arith.constant 0 : index
    %6 = vector.load %arg5[%c0_6, %c0_7] : memref<8x256xf32, #tpu.memory_space<vmem>>, vector<1x32xf32>
    %7 = vector.broadcast %6 : vector<1x32xf32> to vector<256x32xf32>
    %8 = arith.addf %5, %7 : vector<256x32xf32>
    %cst_8 = arith.constant 0.000000e+00 : f32
    %9 = vector.broadcast %cst_8 : f32 to vector<256x32xf32>
    %10 = arith.maximumf %8, %9 : vector<256x32xf32>
    %11 = arith.truncf %10 : vector<256x32xf32> to vector<256x32xbf16>
    %c128 = arith.constant 128 : index
    %c0_9 = arith.constant 0 : index
    %12 = vector.load %arg4[%c128, %c0_9] : memref<736x256xbf16, #tpu.memory_space<vmem>>, vector<32x64xbf16>
    %cst_10 = arith.constant dense<0.000000e+00> : vector<256x64xf32>
    %13 = tpu.matmul %11, %12, %cst_10 {dimension_numbers = #tpu.dot_dimension_numbers<[1], [0], [0], [1], [0, 0, 1, 1], [], []>} : vector<256x32xbf16>, vector<32x64xbf16>, vector<256x64xf32> -> vector<256x64xf32>
    %14 = arith.truncf %13 : vector<256x64xf32> to vector<256x64xbf16>
    %cst_11 = arith.constant dense<0.000000e+00> : vector<256x64xf32>
    %15 = tpu.matmul %0, %14, %cst_11 {dimension_numbers = #tpu.dot_dimension_numbers<[1], [0], [0], [1], [0, 0, 1, 1], [], []>} : vector<256x256xbf16>, vector<256x64xbf16>, vector<256x64xf32> -> vector<256x64xf32>
    %c1 = arith.constant 1 : index
    %c0_12 = arith.constant 0 : index
    %16 = vector.load %arg5[%c1, %c0_12] : memref<8x256xf32, #tpu.memory_space<vmem>>, vector<1x64xf32>
    %17 = vector.broadcast %16 : vector<1x64xf32> to vector<256x64xf32>
    %18 = arith.addf %15, %17 : vector<256x64xf32>
    %cst_13 = arith.constant 0.000000e+00 : f32
    %19 = vector.broadcast %cst_13 : f32 to vector<256x64xf32>
    %20 = arith.maximumf %18, %19 : vector<256x64xf32>
    %21 = arith.truncf %20 : vector<256x64xf32> to vector<256x64xbf16>
    %c160 = arith.constant 160 : index
    %c0_14 = arith.constant 0 : index
    %22 = vector.load %arg4[%c160, %c0_14] : memref<736x256xbf16, #tpu.memory_space<vmem>>, vector<64x128xbf16>
    %cst_15 = arith.constant dense<0.000000e+00> : vector<256x128xf32>
    %23 = tpu.matmul %21, %22, %cst_15 {dimension_numbers = #tpu.dot_dimension_numbers<[1], [0], [0], [1], [0, 0, 1, 1], [], []>} : vector<256x64xbf16>, vector<64x128xbf16>, vector<256x128xf32> -> vector<256x128xf32>
    %24 = arith.truncf %23 : vector<256x128xf32> to vector<256x128xbf16>
    %cst_16 = arith.constant dense<0.000000e+00> : vector<256x128xf32>
    %25 = tpu.matmul %0, %24, %cst_16 {dimension_numbers = #tpu.dot_dimension_numbers<[1], [0], [0], [1], [0, 0, 1, 1], [], []>} : vector<256x256xbf16>, vector<256x128xbf16>, vector<256x128xf32> -> vector<256x128xf32>
    %c2 = arith.constant 2 : index
    %c0_17 = arith.constant 0 : index
    %26 = vector.load %arg5[%c2, %c0_17] : memref<8x256xf32, #tpu.memory_space<vmem>>, vector<1x128xf32>
    %27 = vector.broadcast %26 : vector<1x128xf32> to vector<256x128xf32>
    %28 = arith.addf %25, %27 : vector<256x128xf32>
    %cst_18 = arith.constant 0.000000e+00 : f32
    %29 = vector.broadcast %cst_18 : f32 to vector<256x128xf32>
    %30 = arith.maximumf %28, %29 : vector<256x128xf32>
    %31 = arith.truncf %30 : vector<256x128xf32> to vector<256x128xbf16>
    %c224 = arith.constant 224 : index
    %c0_19 = arith.constant 0 : index
    %32 = vector.load %arg4[%c224, %c0_19] : memref<736x256xbf16, #tpu.memory_space<vmem>>, vector<128x256xbf16>
    %cst_20 = arith.constant dense<0.000000e+00> : vector<256x256xf32>
    %33 = tpu.matmul %31, %32, %cst_20 {dimension_numbers = #tpu.dot_dimension_numbers<[1], [0], [0], [1], [0, 0, 1, 1], [], []>} : vector<256x128xbf16>, vector<128x256xbf16>, vector<256x256xf32> -> vector<256x256xf32>
    %34 = arith.truncf %33 : vector<256x256xf32> to vector<256x256xbf16>
    %cst_21 = arith.constant dense<0.000000e+00> : vector<256x256xf32>
    %35 = tpu.matmul %0, %34, %cst_21 {dimension_numbers = #tpu.dot_dimension_numbers<[1], [0], [0], [1], [0, 0, 1, 1], [], []>} : vector<256x256xbf16>, vector<256x256xbf16>, vector<256x256xf32> -> vector<256x256xf32>
    %c3 = arith.constant 3 : index
    %c0_22 = arith.constant 0 : index
    %36 = vector.load %arg5[%c3, %c0_22] : memref<8x256xf32, #tpu.memory_space<vmem>>, vector<1x256xf32>
    %37 = vector.broadcast %36 : vector<1x256xf32> to vector<256x256xf32>
    %38 = arith.addf %35, %37 : vector<256x256xf32>
    %cst_23 = arith.constant 0.000000e+00 : f32
    %39 = vector.broadcast %cst_23 : f32 to vector<256x256xf32>
    %40 = arith.maximumf %38, %39 : vector<256x256xf32>
    %41 = arith.truncf %40 : vector<256x256xf32> to vector<256x256xbf16>
    %c0_24 = arith.constant 0 : index
    %c0_25 = arith.constant 0 : index
    %42 = vector.load %arg3[%c0_24, %c0_25] : memref<8x256xbf16, #tpu.memory_space<vmem>>, vector<8x256xbf16>
    %cst_26 = arith.constant dense<0.000000e+00> : vector<8x256xf32>
    %43 = tpu.matmul %42, %41, %cst_26 {dimension_numbers = #tpu.dot_dimension_numbers<[1], [0], [0], [1], [0, 0, 1, 1], [], []>} : vector<8x256xbf16>, vector<256x256xbf16>, vector<8x256xf32> -> vector<8x256xf32>
    %44 = arith.truncf %43 : vector<8x256xf32> to vector<8x256xbf16>
    %c352 = arith.constant 352 : index
    %c0_27 = arith.constant 0 : index
    %45 = vector.load %arg4[%c352, %c0_27] : memref<736x256xbf16, #tpu.memory_space<vmem>>, vector<256x128xbf16>
    %cst_28 = arith.constant dense<0.000000e+00> : vector<8x128xf32>
    %46 = tpu.matmul %44, %45, %cst_28 {dimension_numbers = #tpu.dot_dimension_numbers<[1], [0], [0], [1], [0, 0, 1, 1], [], []>} : vector<8x256xbf16>, vector<256x128xbf16>, vector<8x128xf32> -> vector<8x128xf32>
    %c4 = arith.constant 4 : index
    %c0_29 = arith.constant 0 : index
    %47 = vector.load %arg5[%c4, %c0_29] : memref<8x256xf32, #tpu.memory_space<vmem>>, vector<1x128xf32>
    %48 = vector.broadcast %47 : vector<1x128xf32> to vector<8x128xf32>
    %49 = arith.addf %46, %48 : vector<8x128xf32>
    %cst_30 = arith.constant 0.000000e+00 : f32
    %50 = vector.broadcast %cst_30 : f32 to vector<8x128xf32>
    %51 = arith.maximumf %49, %50 : vector<8x128xf32>
    %52 = arith.truncf %51 : vector<8x128xf32> to vector<8x128xbf16>
    %c608 = arith.constant 608 : index
    %c0_31 = arith.constant 0 : index
    %53 = vector.load %arg4[%c608, %c0_31] : memref<736x256xbf16, #tpu.memory_space<vmem>>, vector<128x128xbf16>
    %cst_32 = arith.constant dense<0.000000e+00> : vector<8x128xf32>
    %54 = tpu.matmul %52, %53, %cst_32 {dimension_numbers = #tpu.dot_dimension_numbers<[1], [0], [0], [1], [0, 0, 1, 1], [], []>} : vector<8x128xbf16>, vector<128x128xbf16>, vector<8x128xf32> -> vector<8x128xf32>
    %c5 = arith.constant 5 : index
    %c0_33 = arith.constant 0 : index
    %55 = vector.load %arg5[%c5, %c0_33] : memref<8x256xf32, #tpu.memory_space<vmem>>, vector<1x128xf32>
    %56 = vector.broadcast %55 : vector<1x128xf32> to vector<8x128xf32>
    %57 = arith.addf %54, %56 : vector<8x128xf32>
    %58 = tpu.iota {dimensions = array<i32: 1>} : vector<8x128xi32>
    %c4_i32 = arith.constant 4 : i32
    %59 = vector.broadcast %c4_i32 : i32 to vector<8x128xi32>
    %60 = arith.cmpi slt, %58, %59 : vector<8x128xi32>
    %cst_34 = arith.constant -1.000000e+30 : f32
    %61 = vector.broadcast %cst_34 : f32 to vector<8x128xf32>
    %62 = arith.select %60, %57, %61 : vector<8x128xi1>, vector<8x128xf32>
    %cst_35 = arith.constant dense<0xFF800000> : vector<8xf32>
    %63 = vector.multi_reduction <maximumf>, %62, %cst_35 [1] : vector<8x128xf32> to vector<8xf32>
    %64 = vector.shape_cast %63 : vector<8xf32> to vector<8x1xf32>
    %65 = vector.broadcast %64 : vector<8x1xf32> to vector<8x128xf32>
    %66 = arith.subf %62, %65 : vector<8x128xf32>
    %67 = math.exp %66 : vector<8x128xf32>
    %cst_36 = arith.constant dense<0.000000e+00> : vector<8xf32>
    %68 = vector.multi_reduction <add>, %67, %cst_36 [1] : vector<8x128xf32> to vector<8xf32>
    %69 = vector.shape_cast %68 : vector<8xf32> to vector<8x1xf32>
    %70 = math.log %69 : vector<8x1xf32>
    %71 = vector.broadcast %70 : vector<8x1xf32> to vector<8x128xf32>
    %72 = arith.subf %66, %71 : vector<8x128xf32>
    %c0_37 = arith.constant 0 : index
    %c0_38 = arith.constant 0 : index
    %73 = vector.load %arg6[%c0_37, %c0_38] : memref<8x128xf32, #tpu.memory_space<vmem>>, vector<8x128xf32>
    tpu.vector_store %arg6[%c0_37, %c0_38], %72 {strides = array<i32>} : memref<8x128xf32, #tpu.memory_space<vmem>>, vector<8x128xf32>,
    return
  }
  func.func @transform_0(%arg0: i32) -> (i32, i32) {
    %c0_i32 = arith.constant 0 : i32
    %c0_i32_0 = arith.constant 0 : i32
    %c0_i32_1 = arith.constant 0 : i32
    return %c0_i32, %c0_i32_0 : i32, i32
  }
  func.func @transform_1(%arg0: i32) -> (i32, i32) {
    %c0_i32 = arith.constant 0 : i32
    %c0_i32_0 = arith.constant 0 : i32
    %c0_i32_1 = arith.constant 0 : i32
    return %c0_i32, %c0_i32_0 : i32, i32
  }
  func.func @transform_2(%arg0: i32) -> (i32, i32) {
    %c0_i32 = arith.constant 0 : i32
    %c0_i32_0 = arith.constant 0 : i32
    %c0_i32_1 = arith.constant 0 : i32
    return %c0_i32, %c0_i32_0 : i32, i32
  }
  func.func @transform_3(%arg0: i32) -> (i32, i32) {
    %c0_i32 = arith.constant 0 : i32
    %c0_i32_0 = arith.constant 0 : i32
    %c0_i32_1 = arith.constant 0 : i32
    return %c0_i32, %c0_i32_0 : i32, i32
  }
  func.func @transform_4(%arg0: i32) -> (i32, i32) {
    %c0_i32 = arith.constant 0 : i32
    %c0_i32_0 = arith.constant 0 : i32
    %c0_i32_1 = arith.constant 0 : i32
    return %c0_i32, %c0_i32_0 : i32, i32
  }
  func.func @transform_5(%arg0: i32) -> (i32, i32) {
    %c0_i32 = arith.constant 0 : i32
    %c0_i32_0 = arith.constant 0 : i32
    %c0_i32_1 = arith.constant 0 : i32
    return %c0_i32, %c0_i32_0 : i32, i32
  }
}

</mosaic_0001>

<llo_original>
// kernel: net_forward.1
$region0: #{net_forward.1}
  #allocation0 [shape = 'u32[]', space=smem, size = 0x4, offset = 0x4, fixed_abs, tag = 'smem constant byte address 0x4 - core index']
  #allocation1 [shape = 'u32[144,128]{1,0:T(1,128)}', space=vmem, size = 0x12000, scoped, tag = 'internal scratch']
  %s0 = inlined_call_operand.vmem [shape: bf16[256,256], index: 0, kind: input, shape index: {}]
  %s1 = inlined_call_operand.vmem [shape: bf16[256,128], index: 1, kind: input, shape index: {}]
  %s2 = inlined_call_operand.vmem [shape: bf16[8,256], index: 2, kind: input, shape index: {}]
  %s3 = inlined_call_operand.vmem [shape: bf16[736,256], index: 3, kind: input, shape index: {}]
  %s4 = inlined_call_operand.vmem [shape: f32[8,256], index: 4, kind: input, shape index: {}]
  %s5 = inlined_call_operand.vmem [shape: f32[8,128], index: 5, kind: output, shape index: {}]
  %s6 = sld [smem:[#allocation0]]
  $region30: #{net_forward.1} parent=0
    _
  %s8 = ssub.s32 1, %s6
  %s9 = scalar_select 0, %s8, %s6
  // Predicated region
  $region2: #{net_forward.1} parent=0 // pred_check
    _
  $region3: #{net_forward.1} parent=0 // pred_check_branch
    %11 = sbr.rel (0) target = $region5
  $region4: #{net_forward.1} parent=0 // pred_region
    _
  $region5: #{net_forward.1} parent=0 // pred_fallthru
    _
  // Predicated region
  $region6: #{net_forward.1} parent=0 // pred_check
    _
  $region7: #{net_forward.1} parent=0 // pred_check_branch
    %13 = sbr.rel (0) target = $region9
  $region8: #{net_forward.1} parent=0 // pred_region
    _
  $region9: #{net_forward.1} parent=0 // pred_fallthru
    _
  // Predicated region
  $region10: #{net_forward.1} parent=0 // pred_check
    _
  $region11: #{net_forward.1} parent=0 // pred_check_branch
    %15 = sbr.rel (0) target = $region13
  $region12: #{net_forward.1} parent=0 // pred_region
    _
  $region13: #{net_forward.1} parent=0 // pred_fallthru
    _
  // Predicated region
  $region14: #{net_forward.1} parent=0 // pred_check
    _
  $region15: #{net_forward.1} parent=0 // pred_check_branch
    %17 = sbr.rel (0) target = $region17
  $region16: #{net_forward.1} parent=0 // pred_region
    _
  $region17: #{net_forward.1} parent=0 // pred_fallthru
    _
  // Predicated region
  $region18: #{net_forward.1} parent=0 // pred_check
    _
  $region19: #{net_forward.1} parent=0 // pred_check_branch
    %19 = sbr.rel (0) target = $region21
  $region20: #{net_forward.1} parent=0 // pred_region
    _
  $region21: #{net_forward.1} parent=0 // pred_fallthru
    _
  %v21 = vld [vmem:[%s0] sm:$0xff]
  %v22 = vld [vmem:[%s0 + $0x8] sm:$0xff]
  %v23 = vld [vmem:[%s0 + $0x10] sm:$0xff]
  %v24 = vld [vmem:[%s0 + $0x18] sm:$0xff]
  %v25 = vld [vmem:[%s0 + $0x20] sm:$0xff]
  %v26 = vld [vmem:[%s0 + $0x28] sm:$0xff]
  %v27 = vld [vmem:[%s0 + $0x30] sm:$0xff]
  %v28 = vld [vmem:[%s0 + $0x38] sm:$0xff]
  %v29 = vld [vmem:[%s0 + $0x40] sm:$0xff]
  %v30 = vld [vmem:[%s0 + $0x48] sm:$0xff]
  %v31 = vld [vmem:[%s0 + $0x50] sm:$0xff]
  %v32 = vld [vmem:[%s0 + $0x58] sm:$0xff]
  %v33 = vld [vmem:[%s0 + $0x60] sm:$0xff]
  %v34 = vld [vmem:[%s0 + $0x68] sm:$0xff]
  %v35 = vld [vmem:[%s0 + $0x70] sm:$0xff]
  %v36 = vld [vmem:[%s0 + $0x78] sm:$0xff]
  %v37 = vld [vmem:[%s0 + $0x80] sm:$0xff]
  %v38 = vld [vmem:[%s0 + $0x88] sm:$0xff]
  %v39 = vld [vmem:[%s0 + $0x90] sm:$0xff]
  %v40 = vld [vmem:[%s0 + $0x98] sm:$0xff]
  %v41 = vld [vmem:[%s0 + $0xa0] sm:$0xff]
  %v42 = vld [vmem:[%s0 + $0xa8] sm:$0xff]
  %v43 = vld [vmem:[%s0 + $0xb0] sm:$0xff]
  %v44 = vld [vmem:[%s0 + $0xb8] sm:$0xff]
  %v45 = vld [vmem:[%s0 + $0xc0] sm:$0xff]
  %v46 = vld [vmem:[%s0 + $0xc8] sm:$0xff]
  %v47 = vld [vmem:[%s0 + $0xd0] sm:$0xff]
  %v48 = vld [vmem:[%s0 + $0xd8] sm:$0xff]
  %v49 = vld [vmem:[%s0 + $0xe0] sm:$0xff]
  %v50 = vld [vmem:[%s0 + $0xe8] sm:$0xff]
  %v51 = vld [vmem:[%s0 + $0xf0] sm:$0xff]
  %v52 = vld [vmem:[%s0 + $0xf8] sm:$0xff]
  %v53 = vld [vmem:[%s1] sm:$0xf]
  %v54 = vld [vmem:[%s1 + $0x4] sm:$0xf]
  %v55 = vld [vmem:[%s1 + $0x8] sm:$0xf]
  %v56 = vld [vmem:[%s1 + $0xc] sm:$0xf]
  %v57 = vld [vmem:[%s1 + $0x10] sm:$0xf]
  %v58 = vld [vmem:[%s1 + $0x14] sm:$0xf]
  %v59 = vld [vmem:[%s1 + $0x18] sm:$0xf]
  %v60 = vld [vmem:[%s1 + $0x1c] sm:$0xf]
  %v61 = vld [vmem:[%s1 + $0x20] sm:$0xf]
  %v62 = vld [vmem:[%s1 + $0x24] sm:$0xf]
  %v63 = vld [vmem:[%s1 + $0x28] sm:$0xf]
  %v64 = vld [vmem:[%s1 + $0x2c] sm:$0xf]
  %v65 = vld [vmem:[%s1 + $0x30] sm:$0xf]
  %v66 = vld [vmem:[%s1 + $0x34] sm:$0xf]
  %v67 = vld [vmem:[%s1 + $0x38] sm:$0xf]
  %v68 = vld [vmem:[%s1 + $0x3c] sm:$0xf]
  %v69 = vld [vmem:[%s1 + $0x40] sm:$0xf]
  %v70 = vld [vmem:[%s1 + $0x44] sm:$0xf]
  %v71 = vld [vmem:[%s1 + $0x48] sm:$0xf]
  %v72 = vld [vmem:[%s1 + $0x4c] sm:$0xf]
  %v73 = vld [vmem:[%s1 + $0x50] sm:$0xf]
  %v74 = vld [vmem:[%s1 + $0x54] sm:$0xf]
  %v75 = vld [vmem:[%s1 + $0x58] sm:$0xf]
  %v76 = vld [vmem:[%s1 + $0x5c] sm:$0xf]
  %v77 = vld [vmem:[%s1 + $0x60] sm:$0xf]
  %v78 = vld [vmem:[%s1 + $0x64] sm:$0xf]
  %v79 = vld [vmem:[%s1 + $0x68] sm:$0xf]
  %v80 = vld [vmem:[%s1 + $0x6c] sm:$0xf]
  %v81 = vld [vmem:[%s1 + $0x70] sm:$0xf]
  %v82 = vld [vmem:[%s1 + $0x74] sm:$0xf]
  %v83 = vld [vmem:[%s1 + $0x78] sm:$0xf]
  %v84 = vld [vmem:[%s1 + $0x7c] sm:$0xf]
  %v85 = vld [vmem:[%s3] sm:$0xf]
  %v86 = vld [vmem:[%s3 + $0x8] sm:$0xf]
  %v87 = vld [vmem:[%s3 + $0x10] sm:$0xf]
  %v88 = vld [vmem:[%s3 + $0x18] sm:$0xf]
  %v89 = vld [vmem:[%s3 + $0x20] sm:$0xf]
  %v90 = vld [vmem:[%s3 + $0x28] sm:$0xf]
  %v91 = vld [vmem:[%s3 + $0x30] sm:$0xf]
  %v92 = vld [vmem:[%s3 + $0x38] sm:$0xf]
  %v93 = vld [vmem:[%s3 + $0x40] sm:$0xf]
  %v94 = vld [vmem:[%s3 + $0x48] sm:$0xf]
  %v95 = vld [vmem:[%s3 + $0x50] sm:$0xf]
  %v96 = vld [vmem:[%s3 + $0x58] sm:$0xf]
  %v97 = vld [vmem:[%s3 + $0x60] sm:$0xf]
  %v98 = vld [vmem:[%s3 + $0x68] sm:$0xf]
  %v99 = vld [vmem:[%s3 + $0x70] sm:$0xf]
  %v100 = vld [vmem:[%s3 + $0x78] sm:$0xf]
  %v133 = vunpack.c.l.b16 %v53
  %v134 = vunpack.c.l.b16 %v54
  %v135 = vunpack.c.l.b16 %v55
  %v136 = vunpack.c.l.b16 %v56
  %v137 = vunpack.c.l.b16 %v57
  %v138 = vunpack.c.l.b16 %v58
  %v139 = vunpack.c.l.b16 %v59
  %v140 = vunpack.c.l.b16 %v60
  %v141 = vunpack.c.l.b16 %v61
  %v142 = vunpack.c.l.b16 %v62
  %v143 = vunpack.c.l.b16 %v63
  %v144 = vunpack.c.l.b16 %v64
  %v145 = vunpack.c.l.b16 %v65
  %v146 = vunpack.c.l.b16 %v66
  %v147 = vunpack.c.l.b16 %v67
  %v148 = vunpack.c.l.b16 %v68
  %v149 = vunpack.c.l.b16 %v69
  %v150 = vunpack.c.l.b16 %v70
  %v151 = vunpack.c.l.b16 %v71
  %v152 = vunpack.c.l.b16 %v72
  %v153 = vunpack.c.l.b16 %v73
  %v154 = vunpack.c.l.b16 %v74
  %v155 = vunpack.c.l.b16 %v75
  %v156 = vunpack.c.l.b16 %v76
  %v157 = vunpack.c.l.b16 %v77
  %v158 = vunpack.c.l.b16 %v78
  %v159 = vunpack.c.l.b16 %v79
  %v160 = vunpack.c.l.b16 %v80
  %v161 = vunpack.c.l.b16 %v81
  %v162 = vunpack.c.l.b16 %v82
  %v163 = vunpack.c.l.b16 %v83
  %v164 = vunpack.c.l.b16 %v84
  %v165 = vpack.c.b16 %v134, %v133
  %v166 = vpack.c.b16 %v136, %v135
  %v167 = vpack.c.b16 %v138, %v137
  %v168 = vpack.c.b16 %v140, %v139
  %v169 = vpack.c.b16 %v142, %v141
  %v170 = vpack.c.b16 %v144, %v143
  %v171 = vpack.c.b16 %v146, %v145
  %v172 = vpack.c.b16 %v148, %v147
  %v173 = vpack.c.b16 %v150, %v149
  %v174 = vpack.c.b16 %v152, %v151
  %v175 = vpack.c.b16 %v154, %v153
  %v176 = vpack.c.b16 %v156, %v155
  %v177 = vpack.c.b16 %v158, %v157
  %v178 = vpack.c.b16 %v160, %v159
  %v179 = vpack.c.b16 %v162, %v161
  %v180 = vpack.c.b16 %v164, %v163
  %v213 = vunpack.c.l.b16 %v85
  %v214 = vunpack.c.l.b16 %v86
  %v215 = vunpack.c.l.b16 %v87
  %v216 = vunpack.c.l.b16 %v88
  %v217 = vunpack.c.l.b16 %v89
  %v218 = vunpack.c.l.b16 %v90
  %v219 = vunpack.c.l.b16 %v91
  %v220 = vunpack.c.l.b16 %v92
  %v221 = vunpack.c.l.b16 %v93
  %v222 = vunpack.c.l.b16 %v94
  %v223 = vunpack.c.l.b16 %v95
  %v224 = vunpack.c.l.b16 %v96
  %v225 = vunpack.c.l.b16 %v97
  %v226 = vunpack.c.l.b16 %v98
  %v227 = vunpack.c.l.b16 %v99
  %v228 = vunpack.c.l.b16 %v100
  %v229 = vpack.c.b16 %v214, %v213
  %v230 = vpack.c.b16 %v216, %v215
  %v231 = vpack.c.b16 %v218, %v217
  %v232 = vpack.c.b16 %v220, %v219
  %v233 = vpack.c.b16 %v222, %v221
  %v234 = vpack.c.b16 %v224, %v223
  %v235 = vpack.c.b16 %v226, %v225
  %v236 = vpack.c.b16 %v228, %v227
  %245 = vmatprep.subr.bf16.mxu0 0
  %246 = vmatpush1.bf16.msra.mxu0 %v236
  %247 = vmatprep.subr.bf16.mxu0 0
  %248 = vmatpush1.bf16.msra.mxu0 %v235
  %249 = vmatprep.subr.bf16.mxu0 0
  %250 = vmatpush1.bf16.msra.mxu0 %v234
  %251 = vmatprep.subr.bf16.mxu0 0
  %252 = vmatpush1.bf16.msra.mxu0 %v233
  %253 = vmatprep.subr.bf16.mxu0 0
  %254 = vmatpush1.bf16.msra.mxu0 %v232
  %255 = vmatprep.subr.bf16.mxu0 0
  %256 = vmatpush1.bf16.msra.mxu0 %v231
  %257 = vmatprep.subr.bf16.mxu0 0
  %258 = vmatpush1.bf16.msra.mxu0 %v230
  %259 = vmatprep.subr.bf16.mxu0 0
  %260 = vmatpush1.bf16.msra.mxu0 %v229
  %261 = vmatprep.subr.bf16.mxu0 0
  %262 = vmatpush2.bf16.msra.mxu0 0
  %263 = vmatprep.subr.bf16.mxu0 0
  %264 = vmatpush2.bf16.msra.mxu0 0
  %265 = vmatprep.subr.bf16.mxu0 0
  %266 = vmatpush2.bf16.msra.mxu0 0
  %267 = vmatprep.subr.bf16.mxu0 0
  %268 = vmatpush2.bf16.msra.mxu0 0
  %269 = vmatprep.subr.bf16.mxu0 0
  %270 = vmatpush2.bf16.msra.mxu0 0
  %271 = vmatprep.subr.bf16.mxu0 0
  %272 = vmatpush2.bf16.msra.mxu0 0
  %273 = vmatprep.subr.bf16.mxu0 0
  %274 = vmatpush2.bf16.msra.mxu0 0
  %275 = vmatprep.subr.bf16.mxu0 0
  %276 = vmatpush2.bf16.msra.mxu0 0
  %277 = vmatprep.mubr.bf16.mxu0 0
  %278 = vmatmul.mubr.bf16.gmra.mxu0 %v165
  %v279 = vpop.f32.mrf.mxu0
  %v280 = vadd.f32 0.0, %v279
  %v281 = vpop.f32.mrf.mxu0
  %v282 = vpop.f32.mrf.mxu0
  %v283 = vadd.f32 0.0, %v282
  %v284 = vpop.f32.mrf.mxu0
  %285 = vmatprep.mubr.bf16.mxu0 0
  %286 = vmatmul.mubr.bf16.gmra.mxu0 %v166
  %v287 = vpop.f32.mrf.mxu0
  %v288 = vadd.f32 0.0, %v287
  %v289 = vpop.f32.mrf.mxu0
  %v290 = vpop.f32.mrf.mxu0
  %v291 = vadd.f32 0.0, %v290
  %v292 = vpop.f32.mrf.mxu0
  %293 = vmatprep.mubr.bf16.mxu0 0
  %294 = vmatmul.mubr.bf16.gmra.mxu0 %v167
  %v295 = vpop.f32.mrf.mxu0
  %v296 = vadd.f32 0.0, %v295
  %v297 = vpop.f32.mrf.mxu0
  %v298 = vpop.f32.mrf.mxu0
  %v299 = vadd.f32 0.0, %v298
  %v300 = vpop.f32.mrf.mxu0
  %301 = vmatprep.mubr.bf16.mxu0 0
  %302 = vmatmul.mubr.bf16.gmra.mxu0 %v168
  %v303 = vpop.f32.mrf.mxu0
  %v304 = vadd.f32 0.0, %v303
  %v305 = vpop.f32.mrf.mxu0
  %v306 = vpop.f32.mrf.mxu0
  %v307 = vadd.f32 0.0, %v306
  %v308 = vpop.f32.mrf.mxu0
  %309 = vmatprep.mubr.bf16.mxu0 0
  %310 = vmatmul.mubr.bf16.gmra.mxu0 %v169
  %v311 = vpop.f32.mrf.mxu0
  %v312 = vadd.f32 0.0, %v311
  %v313 = vpop.f32.mrf.mxu0
  %v314 = vpop.f32.mrf.mxu0
  %v315 = vadd.f32 0.0, %v314
  %v316 = vpop.f32.mrf.mxu0
  %317 = vmatprep.mubr.bf16.mxu0 0
  %318 = vmatmul.mubr.bf16.gmra.mxu0 %v170
  %v319 = vpop.f32.mrf.mxu0
  %v320 = vadd.f32 0.0, %v319
  %v321 = vpop.f32.mrf.mxu0
  %v322 = vpop.f32.mrf.mxu0
  %v323 = vadd.f32 0.0, %v322
  %v324 = vpop.f32.mrf.mxu0
  %325 = vmatprep.mubr.bf16.mxu0 0
  %326 = vmatmul.mubr.bf16.gmra.mxu0 %v171
  %v327 = vpop.f32.mrf.mxu0
  %v328 = vadd.f32 0.0, %v327
  %v329 = vpop.f32.mrf.mxu0
  %v330 = vpop.f32.mrf.mxu0
  %v331 = vadd.f32 0.0, %v330
  %v332 = vpop.f32.mrf.mxu0
  %333 = vmatprep.mubr.bf16.mxu0 0
  %334 = vmatmul.mubr.bf16.gmra.mxu0 %v172
  %v335 = vpop.f32.mrf.mxu0
  %v336 = vadd.f32 0.0, %v335
  %v337 = vpop.f32.mrf.mxu0
  %v338 = vpop.f32.mrf.mxu0
  %v339 = vadd.f32 0.0, %v338
  %v340 = vpop.f32.mrf.mxu0
  %341 = vmatprep.mubr.bf16.mxu0 0
  %342 = vmatmul.mubr.bf16.gmra.mxu0 %v173
  %v343 = vpop.f32.mrf.mxu0
  %v344 = vadd.f32 0.0, %v343
  %v345 = vpop.f32.mrf.mxu0
  %v346 = vpop.f32.mrf.mxu0
  %v347 = vadd.f32 0.0, %v346
  %v348 = vpop.f32.mrf.mxu0
  %349 = vmatprep.mubr.bf16.mxu0 0
  %350 = vmatmul.mubr.bf16.gmra.mxu0 %v174
  %v351 = vpop.f32.mrf.mxu0
  %v352 = vadd.f32 0.0, %v351
  %v353 = vpop.f32.mrf.mxu0
  %v354 = vpop.f32.mrf.mxu0
  %v355 = vadd.f32 0.0, %v354
  %v356 = vpop.f32.mrf.mxu0
  %357 = vmatprep.mubr.bf16.mxu0 0
  %358 = vmatmul.mubr.bf16.gmra.mxu0 %v175
  %v359 = vpop.f32.mrf.mxu0
  %v360 = vadd.f32 0.0, %v359
  %v361 = vpop.f32.mrf.mxu0
  %v362 = vpop.f32.mrf.mxu0
  %v363 = vadd.f32 0.0, %v362
  %v364 = vpop.f32.mrf.mxu0
  %365 = vmatprep.mubr.bf16.mxu0 0
  %366 = vmatmul.mubr.bf16.gmra.mxu0 %v176
  %v367 = vpop.f32.mrf.mxu0
  %v368 = vadd.f32 0.0, %v367
  %v369 = vpop.f32.mrf.mxu0
  %v370 = vpop.f32.mrf.mxu0
  %v371 = vadd.f32 0.0, %v370
  %v372 = vpop.f32.mrf.mxu0
  %373 = vmatprep.mubr.bf16.mxu0 0
  %374 = vmatmul.mubr.bf16.gmra.mxu0 %v177
  %v375 = vpop.f32.mrf.mxu0
  %v376 = vadd.f32 0.0, %v375
  %v377 = vpop.f32.mrf.mxu0
  %v378 = vpop.f32.mrf.mxu0
  %v379 = vadd.f32 0.0, %v378
  %v380 = vpop.f32.mrf.mxu0
  %381 = vmatprep.mubr.bf16.mxu0 0
  %382 = vmatmul.mubr.bf16.gmra.mxu0 %v178
  %v383 = vpop.f32.mrf.mxu0
  %v384 = vadd.f32 0.0, %v383
  %v385 = vpop.f32.mrf.mxu0
  %v386 = vpop.f32.mrf.mxu0
  %v387 = vadd.f32 0.0, %v386
  %v388 = vpop.f32.mrf.mxu0
  %389 = vmatprep.mubr.bf16.mxu0 0
  %390 = vmatmul.mubr.bf16.gmra.mxu0 %v179
  %v391 = vpop.f32.mrf.mxu0
  %v392 = vadd.f32 0.0, %v391
  %v393 = vpop.f32.mrf.mxu0
  %v394 = vpop.f32.mrf.mxu0
  %v395 = vadd.f32 0.0, %v394
  %v396 = vpop.f32.mrf.mxu0
  %397 = vmatprep.mubr.bf16.mxu0 0
  %398 = vmatmul.mubr.bf16.gmra.mxu0 %v180
  %v399 = vpop.f32.mrf.mxu0
  %v400 = vadd.f32 0.0, %v399
  %v401 = vpop.f32.mrf.mxu0
  %v402 = vpop.f32.mrf.mxu0
  %v403 = vadd.f32 0.0, %v402
  %v404 = vpop.f32.mrf.mxu0
  %405 = vdwg.mxu0
  %v406 = vpack.c.bf16 %v283, %v280
  %v407 = vpack.c.bf16 %v291, %v288
  %v408 = vpack.c.bf16 %v299, %v296
  %v409 = vpack.c.bf16 %v307, %v304
  %v410 = vpack.c.bf16 %v315, %v312
  %v411 = vpack.c.bf16 %v323, %v320
  %v412 = vpack.c.bf16 %v331, %v328
  %v413 = vpack.c.bf16 %v339, %v336
  %v414 = vpack.c.bf16 %v347, %v344
  %v415 = vpack.c.bf16 %v355, %v352
  %v416 = vpack.c.bf16 %v363, %v360
  %v417 = vpack.c.bf16 %v371, %v368
  %v418 = vpack.c.bf16 %v379, %v376
  %v419 = vpack.c.bf16 %v387, %v384
  %v420 = vpack.c.bf16 %v395, %v392
  %v421 = vpack.c.bf16 %v403, %v400
  %v422 = vld [vmem:[%s4] ss:$0 sm:$0xff]
  %v455 = vunpack.c.l.b16 %v21
  %v456 = vunpack.c.h.b16 %v21
  %v457 = vunpack.c.l.b16 %v22
  %v458 = vunpack.c.h.b16 %v22
  %v459 = vunpack.c.l.b16 %v23
  %v460 = vunpack.c.h.b16 %v23
  %v461 = vunpack.c.l.b16 %v24
  %v462 = vunpack.c.h.b16 %v24
  %v463 = vunpack.c.l.b16 %v25
  %v464 = vunpack.c.h.b16 %v25
  %v465 = vunpack.c.l.b16 %v26
  %v466 = vunpack.c.h.b16 %v26
  %v467 = vunpack.c.l.b16 %v27
  %v468 = vunpack.c.h.b16 %v27
  %v469 = vunpack.c.l.b16 %v28
  %v470 = vunpack.c.h.b16 %v28
  %v471 = vunpack.c.l.b16 %v29
  %v472 = vunpack.c.h.b16 %v29
  %v473 = vunpack.c.l.b16 %v30
  %v474 = vunpack.c.h.b16 %v30
  %v475 = vunpack.c.l.b16 %v31
  %v476 = vunpack.c.h.b16 %v31
  %v477 = vunpack.c.l.b16 %v32
  %v478 = vunpack.c.h.b16 %v32
  %v479 = vunpack.c.l.b16 %v33
  %v480 = vunpack.c.h.b16 %v33
  %v481 = vunpack.c.l.b16 %v34
  %v482 = vunpack.c.h.b16 %v34
  %v483 = vunpack.c.l.b16 %v35
  %v484 = vunpack.c.h.b16 %v35
  %v485 = vunpack.c.l.b16 %v36
  %v486 = vunpack.c.h.b16 %v36
  %v487 = vunpack.c.l.b16 %v37
  %v488 = vunpack.c.h.b16 %v37
  %v489 = vunpack.c.l.b16 %v38
  %v490 = vunpack.c.h.b16 %v38
  %v491 = vunpack.c.l.b16 %v39
  %v492 = vunpack.c.h.b16 %v39
  %v493 = vunpack.c.l.b16 %v40
  %v494 = vunpack.c.h.b16 %v40
  %v495 = vunpack.c.l.b16 %v41
  %v496 = vunpack.c.h.b16 %v41
  %v497 = vunpack.c.l.b16 %v42
  %v498 = vunpack.c.h.b16 %v42
  %v499 = vunpack.c.l.b16 %v43
  %v500 = vunpack.c.h.b16 %v43
  %v501 = vunpack.c.l.b16 %v44
  %v502 = vunpack.c.h.b16 %v44
  %v503 = vunpack.c.l.b16 %v45
  %v504 = vunpack.c.h.b16 %v45
  %v505 = vunpack.c.l.b16 %v46
  %v506 = vunpack.c.h.b16 %v46
  %v507 = vunpack.c.l.b16 %v47
  %v508 = vunpack.c.h.b16 %v47
  %v509 = vunpack.c.l.b16 %v48
  %v510 = vunpack.c.h.b16 %v48
  %v511 = vunpack.c.l.b16 %v49
  %v512 = vunpack.c.h.b16 %v49
  %v513 = vunpack.c.l.b16 %v50
  %v514 = vunpack.c.h.b16 %v50
  %v515 = vunpack.c.l.b16 %v51
  %v516 = vunpack.c.h.b16 %v51
  %v517 = vunpack.c.l.b16 %v52
  %v518 = vunpack.c.h.b16 %v52
  %v519 = vpack.c.b16 %v457, %v455
  %v520 = vpack.c.b16 %v458, %v456
  %v521 = vpack.c.b16 %v461, %v459
  %v522 = vpack.c.b16 %v462, %v460
  %v523 = vpack.c.b16 %v465, %v463
  %v524 = vpack.c.b16 %v466, %v464
  %v525 = vpack.c.b16 %v469, %v467
  %v526 = vpack.c.b16 %v470, %v468
  %v527 = vpack.c.b16 %v473, %v471
  %v528 = vpack.c.b16 %v474, %v472
  %v529 = vpack.c.b16 %v477, %v475
  %v530 = vpack.c.b16 %v478, %v476
  %v531 = vpack.c.b16 %v481, %v479
  %v532 = vpack.c.b16 %v482, %v480
  %v533 = vpack.c.b16 %v485, %v483
  %v534 = vpack.c.b16 %v486, %v484
  %v535 = vpack.c.b16 %v489, %v487
  %v536 = vpack.c.b16 %v490, %v488
  %v537 = vpack.c.b16 %v493, %v491
  %v538 = vpack.c.b16 %v494, %v492
  %v539 = vpack.c.b16 %v497, %v495
  %v540 = vpack.c.b16 %v498, %v496
  %v541 = vpack.c.b16 %v501, %v499
  %v542 = vpack.c.b16 %v502, %v500
  %v543 = vpack.c.b16 %v505, %v503
  %v544 = vpack.c.b16 %v506, %v504
  %v545 = vpack.c.b16 %v509, %v507
  %v546 = vpack.c.b16 %v510, %v508
  %v547 = vpack.c.b16 %v513, %v511
  %v548 = vpack.c.b16 %v514, %v512
  %v549 = vpack.c.b16 %v517, %v515
  %v550 = vpack.c.b16 %v518, %v516
  %583 = vmatprep.subr.bf16.mxu0 0
  %584 = vmatpush1.bf16.msra.mxu0 %v413
  %585 = vmatprep.subr.bf16.mxu0 0
  %586 = vmatpush1.bf16.msra.mxu0 %v412
  %587 = vmatprep.subr.bf16.mxu0 0
  %588 = vmatpush1.bf16.msra.mxu0 %v411
  %589 = vmatprep.subr.bf16.mxu0 0
  %590 = vmatpush1.bf16.msra.mxu0 %v410
  %591 = vmatprep.subr.bf16.mxu0 0
  %592 = vmatpush1.bf16.msra.mxu0 %v409
  %593 = vmatprep.subr.bf16.mxu0 0
  %594 = vmatpush1.bf16.msra.mxu0 %v408
  %595 = vmatprep.subr.bf16.mxu0 0
  %596 = vmatpush1.bf16.msra.mxu0 %v407
  %597 = vmatprep.subr.bf16.mxu0 0
  %598 = vmatpush1.bf16.msra.mxu0 %v406
  %599 = vmatprep.subr.bf16.mxu0 0
  %600 = vmatpush2.bf16.msra.mxu0 %v421
  %601 = vmatprep.subr.bf16.mxu0 0
  %602 = vmatpush2.bf16.msra.mxu0 %v420
  %603 = vmatprep.subr.bf16.mxu0 0
  %604 = vmatpush2.bf16.msra.mxu0 %v419
  %605 = vmatprep.subr.bf16.mxu0 0
  %606 = vmatpush2.bf16.msra.mxu0 %v418
  %607 = vmatprep.subr.bf16.mxu0 0
  %608 = vmatpush2.bf16.msra.mxu0 %v417
  %609 = vmatprep.subr.bf16.mxu0 0
  %610 = vmatpush2.bf16.msra.mxu0 %v416
  %611 = vmatprep.subr.bf16.mxu0 0
  %612 = vmatpush2.bf16.msra.mxu0 %v415
  %613 = vmatprep.subr.bf16.mxu0 0
  %614 = vmatpush2.bf16.msra.mxu0 %v414
  %615 = vmatprep.mubr.bf16.mxu0 %v520
  %616 = vmatmul.mubr.bf16.gmra.mxu0 %v519
  %v617 = vpop.f32.mrf.mxu0
  %v618 = vadd.f32 %v422, %v617
  %v619 = vpop.f32.mrf.mxu0
  %v620 = vpop.f32.mrf.mxu0
  %v621 = vadd.f32 %v422, %v620
  %v622 = vpop.f32.mrf.mxu0
  %623 = vmatprep.mubr.bf16.mxu0 %v522
  %624 = vmatmul.mubr.bf16.gmra.mxu0 %v521
  %v625 = vpop.f32.mrf.mxu0
  %v626 = vadd.f32 %v422, %v625
  %v627 = vpop.f32.mrf.mxu0
  %v628 = vpop.f32.mrf.mxu0
  %v629 = vadd.f32 %v422, %v628
  %v630 = vpop.f32.mrf.mxu0
  %631 = vmatprep.mubr.bf16.mxu0 %v524
  %632 = vmatmul.mubr.bf16.gmra.mxu0 %v523
  %v633 = vpop.f32.mrf.mxu0
  %v634 = vadd.f32 %v422, %v633
  %v635 = vpop.f32.mrf.mxu0
  %v636 = vpop.f32.mrf.mxu0
  %v637 = vadd.f32 %v422, %v636
  %v638 = vpop.f32.mrf.mxu0
  %639 = vmatprep.mubr.bf16.mxu0 %v526
  %640 = vmatmul.mubr.bf16.gmra.mxu0 %v525
  %v641 = vpop.f32.mrf.mxu0
  %v642 = vadd.f32 %v422, %v641
  %v643 = vpop.f32.mrf.mxu0
  %v644 = vpop.f32.mrf.mxu0
  %v645 = vadd.f32 %v422, %v644
  %v646 = vpop.f32.mrf.mxu0
  %647 = vmatprep.mubr.bf16.mxu0 %v528
  %648 = vmatmul.mubr.bf16.gmra.mxu0 %v527
  %v649 = vpop.f32.mrf.mxu0
  %v650 = vadd.f32 %v422, %v649
  %v651 = vpop.f32.mrf.mxu0
  %v652 = vpop.f32.mrf.mxu0
  %v653 = vadd.f32 %v422, %v652
  %v654 = vpop.f32.mrf.mxu0
  %655 = vmatprep.mubr.bf16.mxu0 %v530
  %656 = vmatmul.mubr.bf16.gmra.mxu0 %v529
  %v657 = vpop.f32.mrf.mxu0
  %v658 = vadd.f32 %v422, %v657
  %v659 = vpop.f32.mrf.mxu0
  %v660 = vpop.f32.mrf.mxu0
  %v661 = vadd.f32 %v422, %v660
  %v662 = vpop.f32.mrf.mxu0
  %663 = vmatprep.mubr.bf16.mxu0 %v532
  %664 = vmatmul.mubr.bf16.gmra.mxu0 %v531
  %v665 = vpop.f32.mrf.mxu0
  %v666 = vadd.f32 %v422, %v665
  %v667 = vpop.f32.mrf.mxu0
  %v668 = vpop.f32.mrf.mxu0
  %v669 = vadd.f32 %v422, %v668
  %v670 = vpop.f32.mrf.mxu0
  %671 = vmatprep.mubr.bf16.mxu0 %v534
  %672 = vmatmul.mubr.bf16.gmra.mxu0 %v533
  %v673 = vpop.f32.mrf.mxu0
  %v674 = vadd.f32 %v422, %v673
  %v675 = vpop.f32.mrf.mxu0
  %v676 = vpop.f32.mrf.mxu0
  %v677 = vadd.f32 %v422, %v676
  %v678 = vpop.f32.mrf.mxu0
  %679 = vmatprep.mubr.bf16.mxu0 %v536
  %680 = vmatmul.mubr.bf16.gmra.mxu0 %v535
  %v681 = vpop.f32.mrf.mxu0
  %v682 = vadd.f32 %v422, %v681
  %v683 = vpop.f32.mrf.mxu0
  %v684 = vpop.f32.mrf.mxu0
  %v685 = vadd.f32 %v422, %v684
  %v686 = vpop.f32.mrf.mxu0
  %687 = vmatprep.mubr.bf16.mxu0 %v538
  %688 = vmatmul.mubr.bf16.gmra.mxu0 %v537
  %v689 = vpop.f32.mrf.mxu0
  %v690 = vadd.f32 %v422, %v689
  %v691 = vpop.f32.mrf.mxu0
  %v692 = vpop.f32.mrf.mxu0
  %v693 = vadd.f32 %v422, %v692
  %v694 = vpop.f32.mrf.mxu0
  %695 = vmatprep.mubr.bf16.mxu0 %v540
  %696 = vmatmul.mubr.bf16.gmra.mxu0 %v539
  %v697 = vpop.f32.mrf.mxu0
  %v698 = vadd.f32 %v422, %v697
  %v699 = vpop.f32.mrf.mxu0
  %v700 = vpop.f32.mrf.mxu0
  %v701 = vadd.f32 %v422, %v700
  %v702 = vpop.f32.mrf.mxu0
  %703 = vmatprep.mubr.bf16.mxu0 %v542
  %704 = vmatmul.mubr.bf16.gmra.mxu0 %v541
  %v705 = vpop.f32.mrf.mxu0
  %v706 = vadd.f32 %v422, %v705
  %v707 = vpop.f32.mrf.mxu0
  %v708 = vpop.f32.mrf.mxu0
  %v709 = vadd.f32 %v422, %v708
  %v710 = vpop.f32.mrf.mxu0
  %711 = vmatprep.mubr.bf16.mxu0 %v544
  %712 = vmatmul.mubr.bf16.gmra.mxu0 %v543
  %v713 = vpop.f32.mrf.mxu0
  %v714 = vadd.f32 %v422, %v713
  %v715 = vpop.f32.mrf.mxu0
  %v716 = vpop.f32.mrf.mxu0
  %v717 = vadd.f32 %v422, %v716
  %v718 = vpop.f32.mrf.mxu0
  %719 = vmatprep.mubr.bf16.mxu0 %v546
  %720 = vmatmul.mubr.bf16.gmra.mxu0 %v545
  %v721 = vpop.f32.mrf.mxu0
  %v722 = vadd.f32 %v422, %v721
  %v723 = vpop.f32.mrf.mxu0
  %v724 = vpop.f32.mrf.mxu0
  %v725 = vadd.f32 %v422, %v724
  %v726 = vpop.f32.mrf.mxu0
  %727 = vmatprep.mubr.bf16.mxu0 %v548
  %728 = vmatmul.mubr.bf16.gmra.mxu0 %v547
  %v729 = vpop.f32.mrf.mxu0
  %v730 = vadd.f32 %v422, %v729
  %v731 = vpop.f32.mrf.mxu0
  %v732 = vpop.f32.mrf.mxu0
  %v733 = vadd.f32 %v422, %v732
  %v734 = vpop.f32.mrf.mxu0
  %735 = vmatprep.mubr.bf16.mxu0 %v550
  %736 = vmatmul.mubr.bf16.gmra.mxu0 %v549
  %v737 = vpop.f32.mrf.mxu0
  %v738 = vadd.f32 %v422, %v737
  %v739 = vpop.f32.mrf.mxu0
  %v740 = vpop.f32.mrf.mxu0
  %v741 = vadd.f32 %v422, %v740
  %v742 = vpop.f32.mrf.mxu0
  %743 = vdwg.mxu0
  %v744 = vmax.f32 %v618, 0.0
  %v745 = vmax.f32 %v621, 0.0
  %v746 = vmax.f32 %v626, 0.0
  %v747 = vmax.f32 %v629, 0.0
  %v748 = vmax.f32 %v634, 0.0
  %v749 = vmax.f32 %v637, 0.0
  %v750 = vmax.f32 %v642, 0.0
  %v751 = vmax.f32 %v645, 0.0
  %v752 = vmax.f32 %v650, 0.0
  %v753 = vmax.f32 %v653, 0.0
  %v754 = vmax.f32 %v658, 0.0
  %v755 = vmax.f32 %v661, 0.0
  %v756 = vmax.f32 %v666, 0.0
  %v757 = vmax.f32 %v669, 0.0
  %v758 = vmax.f32 %v674, 0.0
  %v759 = vmax.f32 %v677, 0.0
  %v760 = vmax.f32 %v682, 0.0
  %v761 = vmax.f32 %v685, 0.0
  %v762 = vmax.f32 %v690, 0.0
  %v763 = vmax.f32 %v693, 0.0
  %v764 = vmax.f32 %v698, 0.0
  %v765 = vmax.f32 %v701, 0.0
  %v766 = vmax.f32 %v706, 0.0
  %v767 = vmax.f32 %v709, 0.0
  %v768 = vmax.f32 %v714, 0.0
  %v769 = vmax.f32 %v717, 0.0
  %v770 = vmax.f32 %v722, 0.0
  %v771 = vmax.f32 %v725, 0.0
  %v772 = vmax.f32 %v730, 0.0
  %v773 = vmax.f32 %v733, 0.0
  %v774 = vmax.f32 %v738, 0.0
  %v775 = vmax.f32 %v741, 0.0
  %v776 = vpack.c.bf16 %v745, %v744
  %v777 = vpack.c.bf16 %v747, %v746
  %v778 = vpack.c.bf16 %v749, %v748
  %v779 = vpack.c.bf16 %v751, %v750
  %v780 = vpack.c.bf16 %v753, %v752
  %v781 = vpack.c.bf16 %v755, %v754
  %v782 = vpack.c.bf16 %v757, %v756
  %v783 = vpack.c.bf16 %v759, %v758
  %v784 = vpack.c.bf16 %v761, %v760
  %v785 = vpack.c.bf16 %v763, %v762
  %v786 = vpack.c.bf16 %v765, %v764
  %v787 = vpack.c.bf16 %v767, %v766
  %v788 = vpack.c.bf16 %v769, %v768
  %v789 = vpack.c.bf16 %v771, %v770
  %v790 = vpack.c.bf16 %v773, %v772
  %v791 = vpack.c.bf16 %v775, %v774
  %v792 = vld [vmem:[%s3 + $0x80] sm:$0xf]
  %v793 = vld [vmem:[%s3 + $0x88] sm:$0xf]
  %v794 = vld [vmem:[%s3 + $0x90] sm:$0xf]
  %v795 = vld [vmem:[%s3 + $0x98] sm:$0xf]
  %v800 = vunpack.c.l.b16 %v792
  %v801 = vunpack.c.l.b16 %v793
  %v802 = vunpack.c.l.b16 %v794
  %v803 = vunpack.c.l.b16 %v795
  %v804 = vpack.c.b16 %v801, %v800
  %v805 = vpack.c.b16 %v803, %v802
  %vm808 = vcmask 261120
  %v810 = vsel %vm808, %v776, 0
  %v813 = vsel %vm808, %v777, 0
  %v816 = vsel %vm808, %v778, 0
  %v819 = vsel %vm808, %v779, 0
  %v822 = vsel %vm808, %v780, 0
  %v825 = vsel %vm808, %v781, 0
  %v828 = vsel %vm808, %v782, 0
  %v831 = vsel %vm808, %v783, 0
  %v834 = vsel %vm808, %v784, 0
  %v837 = vsel %vm808, %v785, 0
  %v840 = vsel %vm808, %v786, 0
  %v843 = vsel %vm808, %v787, 0
  %v846 = vsel %vm808, %v788, 0
  %v849 = vsel %vm808, %v789, 0
  %v852 = vsel %vm808, %v790, 0
  %v855 = vsel %vm808, %v791, 0
  %857 = vmatprep.subr.bf16.mxu0 0
  %858 = vmatpush1.bf16.msra.mxu0 0
  %859 = vmatprep.subr.bf16.mxu0 0
  %860 = vmatpush1.bf16.msra.mxu0 0
  %861 = vmatprep.subr.bf16.mxu0 0
  %862 = vmatpush1.bf16.msra.mxu0 0
  %863 = vmatprep.subr.bf16.mxu0 0
  %864 = vmatpush1.bf16.msra.mxu0 0
  %865 = vmatprep.subr.bf16.mxu0 0
  %866 = vmatpush1.bf16.msra.mxu0 0
  %867 = vmatprep.subr.bf16.mxu0 0
  %868 = vmatpush1.bf16.msra.mxu0 0
  %869 = vmatprep.subr.bf16.mxu0 0
  %870 = vmatpush1.bf16.msra.mxu0 %v805
  %871 = vmatprep.subr.bf16.mxu0 0
  %872 = vmatpush1.bf16.msra.mxu0 %v804
  %873 = vmatprep.subr.bf16.mxu0 0
  %874 = vmatpush2.bf16.msra.mxu0 0
  %875 = vmatprep.subr.bf16.mxu0 0
  %876 = vmatpush2.bf16.msra.mxu0 0
  %877 = vmatprep.subr.bf16.mxu0 0
  %878 = vmatpush2.bf16.msra.mxu0 0
  %879 = vmatprep.subr.bf16.mxu0 0
  %880 = vmatpush2.bf16.msra.mxu0 0
  %881 = vmatprep.subr.bf16.mxu0 0
  %882 = vmatpush2.bf16.msra.mxu0 0
  %883 = vmatprep.subr.bf16.mxu0 0
  %884 = vmatpush2.bf16.msra.mxu0 0
  %885 = vmatprep.subr.bf16.mxu0 0
  %886 = vmatpush2.bf16.msra.mxu0 0
  %887 = vmatprep.subr.bf16.mxu0 0
  %888 = vmatpush2.bf16.msra.mxu0 0
  %889 = vmatprep.mubr.bf16.mxu0 0
  %890 = vmatmul.mubr.bf16.gmra.mxu0 %v810
  %v891 = vpop.f32.mrf.mxu0
  %v892 = vadd.f32 0.0, %v891
  %v893 = vpop.f32.mrf.mxu0
  %v894 = vpop.f32.mrf.mxu0
  %v895 = vadd.f32 0.0, %v894
  %v896 = vpop.f32.mrf.mxu0
  %897 = vmatprep.mubr.bf16.mxu0 0
  %898 = vmatmul.mubr.bf16.gmra.mxu0 %v813
  %v899 = vpop.f32.mrf.mxu0
  %v900 = vadd.f32 0.0, %v899
  %v901 = vpop.f32.mrf.mxu0
  %v902 = vpop.f32.mrf.mxu0
  %v903 = vadd.f32 0.0, %v902
  %v904 = vpop.f32.mrf.mxu0
  %905 = vmatprep.mubr.bf16.mxu0 0
  %906 = vmatmul.mubr.bf16.gmra.mxu0 %v816
  %v907 = vpop.f32.mrf.mxu0
  %v908 = vadd.f32 0.0, %v907
  %v909 = vpop.f32.mrf.mxu0
  %v910 = vpop.f32.mrf.mxu0
  %v911 = vadd.f32 0.0, %v910
  %v912 = vpop.f32.mrf.mxu0
  %913 = vmatprep.mubr.bf16.mxu0 0
  %914 = vmatmul.mubr.bf16.gmra.mxu0 %v819
  %v915 = vpop.f32.mrf.mxu0
  %v916 = vadd.f32 0.0, %v915
  %v917 = vpop.f32.mrf.mxu0
  %v918 = vpop.f32.mrf.mxu0
  %v919 = vadd.f32 0.0, %v918
  %v920 = vpop.f32.mrf.mxu0
  %921 = vmatprep.mubr.bf16.mxu0 0
  %922 = vmatmul.mubr.bf16.gmra.mxu0 %v822
  %v923 = vpop.f32.mrf.mxu0
  %v924 = vadd.f32 0.0, %v923
  %v925 = vpop.f32.mrf.mxu0
  %v926 = vpop.f32.mrf.mxu0
  %v927 = vadd.f32 0.0, %v926
  %v928 = vpop.f32.mrf.mxu0
  %929 = vmatprep.mubr.bf16.mxu0 0
  %930 = vmatmul.mubr.bf16.gmra.mxu0 %v825
  %v931 = vpop.f32.mrf.mxu0
  %v932 = vadd.f32 0.0, %v931
  %v933 = vpop.f32.mrf.mxu0
  %v934 = vpop.f32.mrf.mxu0
  %v935 = vadd.f32 0.0, %v934
  %v936 = vpop.f32.mrf.mxu0
  %937 = vmatprep.mubr.bf16.mxu0 0
  %938 = vmatmul.mubr.bf16.gmra.mxu0 %v828
  %v939 = vpop.f32.mrf.mxu0
  %v940 = vadd.f32 0.0, %v939
  %v941 = vpop.f32.mrf.mxu0
  %v942 = vpop.f32.mrf.mxu0
  %v943 = vadd.f32 0.0, %v942
  %v944 = vpop.f32.mrf.mxu0
  %945 = vmatprep.mubr.bf16.mxu0 0
  %946 = vmatmul.mubr.bf16.gmra.mxu0 %v831
  %v947 = vpop.f32.mrf.mxu0
  %v948 = vadd.f32 0.0, %v947
  %v949 = vpop.f32.mrf.mxu0
  %v950 = vpop.f32.mrf.mxu0
  %v951 = vadd.f32 0.0, %v950
  %v952 = vpop.f32.mrf.mxu0
  %953 = vmatprep.mubr.bf16.mxu0 0
  %954 = vmatmul.mubr.bf16.gmra.mxu0 %v834
  %v955 = vpop.f32.mrf.mxu0
  %v956 = vadd.f32 0.0, %v955
  %v957 = vpop.f32.mrf.mxu0
  %v958 = vpop.f32.mrf.mxu0
  %v959 = vadd.f32 0.0, %v958
  %v960 = vpop.f32.mrf.mxu0
  %961 = vmatprep.mubr.bf16.mxu0 0
  %962 = vmatmul.mubr.bf16.gmra.mxu0 %v837
  %v963 = vpop.f32.mrf.mxu0
  %v964 = vadd.f32 0.0, %v963
  %v965 = vpop.f32.mrf.mxu0
  %v966 = vpop.f32.mrf.mxu0
  %v967 = vadd.f32 0.0, %v966
  %v968 = vpop.f32.mrf.mxu0
  %969 = vmatprep.mubr.bf16.mxu0 0
  %970 = vmatmul.mubr.bf16.gmra.mxu0 %v840
  %v971 = vpop.f32.mrf.mxu0
  %v972 = vadd.f32 0.0, %v971
  %v973 = vpop.f32.mrf.mxu0
  %v974 = vpop.f32.mrf.mxu0
  %v975 = vadd.f32 0.0, %v974
  %v976 = vpop.f32.mrf.mxu0
  %977 = vmatprep.mubr.bf16.mxu0 0
  %978 = vmatmul.mubr.bf16.gmra.mxu0 %v843
  %v979 = vpop.f32.mrf.mxu0
  %v980 = vadd.f32 0.0, %v979
  %v981 = vpop.f32.mrf.mxu0
  %v982 = vpop.f32.mrf.mxu0
  %v983 = vadd.f32 0.0, %v982
  %v984 = vpop.f32.mrf.mxu0
  %985 = vmatprep.mubr.bf16.mxu0 0
  %986 = vmatmul.mubr.bf16.gmra.mxu0 %v846
  %v987 = vpop.f32.mrf.mxu0
  %v988 = vadd.f32 0.0, %v987
  %v989 = vpop.f32.mrf.mxu0
  %v990 = vpop.f32.mrf.mxu0
  %v991 = vadd.f32 0.0, %v990
  %v992 = vpop.f32.mrf.mxu0
  %993 = vmatprep.mubr.bf16.mxu0 0
  %994 = vmatmul.mubr.bf16.gmra.mxu0 %v849
  %v995 = vpop.f32.mrf.mxu0
  %v996 = vadd.f32 0.0, %v995
  %v997 = vpop.f32.mrf.mxu0
  %v998 = vpop.f32.mrf.mxu0
  %v999 = vadd.f32 0.0, %v998
  %v1000 = vpop.f32.mrf.mxu0
  %1001 = vmatprep.mubr.bf16.mxu0 0
  %1002 = vmatmul.mubr.bf16.gmra.mxu0 %v852
  %v1003 = vpop.f32.mrf.mxu0
  %v1004 = vadd.f32 0.0, %v1003
  %v1005 = vpop.f32.mrf.mxu0
  %v1006 = vpop.f32.mrf.mxu0
  %v1007 = vadd.f32 0.0, %v1006
  %v1008 = vpop.f32.mrf.mxu0
  %1009 = vmatprep.mubr.bf16.mxu0 0
  %1010 = vmatmul.mubr.bf16.gmra.mxu0 %v855
  %v1011 = vpop.f32.mrf.mxu0
  %v1012 = vadd.f32 0.0, %v1011
  %v1013 = vpop.f32.mrf.mxu0
  %v1014 = vpop.f32.mrf.mxu0
  %v1015 = vadd.f32 0.0, %v1014
  %v1016 = vpop.f32.mrf.mxu0
  %1017 = vdwg.mxu0
  %v1018 = vpack.c.bf16 %v895, %v892
  %v1019 = vpack.c.bf16 %v903, %v900
  %v1020 = vpack.c.bf16 %v911, %v908
  %v1021 = vpack.c.bf16 %v919, %v916
  %v1022 = vpack.c.bf16 %v927, %v924
  %v1023 = vpack.c.bf16 %v935, %v932
  %v1024 = vpack.c.bf16 %v943, %v940
  %v1025 = vpack.c.bf16 %v951, %v948
  %v1026 = vpack.c.bf16 %v959, %v956
  %v1027 = vpack.c.bf16 %v967, %v964
  %v1028 = vpack.c.bf16 %v975, %v972
  %v1029 = vpack.c.bf16 %v983, %v980
  %v1030 = vpack.c.bf16 %v991, %v988
  %v1031 = vpack.c.bf16 %v999, %v996
  %v1032 = vpack.c.bf16 %v1007, %v1004
  %v1033 = vpack.c.bf16 %v1015, %v1012
  %v1034 = vld [vmem:[%s4 + $0x1] ss:$0 sm:$0xff]
  %1035 = vmatprep.subr.bf16.mxu0 0
  %1036 = vmatpush1.bf16.msra.mxu0 %v1025
  %1037 = vmatprep.subr.bf16.mxu0 0
  %1038 = vmatpush1.bf16.msra.mxu0 %v1024
  %1039 = vmatprep.subr.bf16.mxu0 0
  %1040 = vmatpush1.bf16.msra.mxu0 %v1023
  %1041 = vmatprep.subr.bf16.mxu0 0
  %1042 = vmatpush1.bf16.msra.mxu0 %v1022
  %1043 = vmatprep.subr.bf16.mxu0 0
  %1044 = vmatpush1.bf16.msra.mxu0 %v1021
  %1045 = vmatprep.subr.bf16.mxu0 0
  %1046 = vmatpush1.bf16.msra.mxu0 %v1020
  %1047 = vmatprep.subr.bf16.mxu0 0
  %1048 = vmatpush1.bf16.msra.mxu0 %v1019
  %1049 = vmatprep.subr.bf16.mxu0 0
  %1050 = vmatpush1.bf16.msra.mxu0 %v1018
  %1051 = vmatprep.subr.bf16.mxu0 0
  %1052 = vmatpush2.bf16.msra.mxu0 %v1033
  %1053 = vmatprep.subr.bf16.mxu0 0
  %1054 = vmatpush2.bf16.msra.mxu0 %v1032
  %1055 = vmatprep.subr.bf16.mxu0 0
  %1056 = vmatpush2.bf16.msra.mxu0 %v1031
  %1057 = vmatprep.subr.bf16.mxu0 0
  %1058 = vmatpush2.bf16.msra.mxu0 %v1030
  %1059 = vmatprep.subr.bf16.mxu0 0
  %1060 = vmatpush2.bf16.msra.mxu0 %v1029
  %1061 = vmatprep.subr.bf16.mxu0 0
  %1062 = vmatpush2.bf16.msra.mxu0 %v1028
  %1063 = vmatprep.subr.bf16.mxu0 0
  %1064 = vmatpush2.bf16.msra.mxu0 %v1027
  %1065 = vmatprep.subr.bf16.mxu0 0
  %1066 = vmatpush2.bf16.msra.mxu0 %v1026
  %1067 = vmatprep.mubr.bf16.mxu0 %v520
  %1068 = vmatmul.mubr.bf16.gmra.mxu0 %v519
  %v1069 = vpop.f32.mrf.mxu0
  %v1070 = vadd.f32 %v1034, %v1069
  %v1071 = vpop.f32.mrf.mxu0
  %v1072 = vpop.f32.mrf.mxu0
  %v1073 = vadd.f32 %v1034, %v1072
  %v1074 = vpop.f32.mrf.mxu0
  %1075 = vmatprep.mubr.bf16.mxu0 %v522
  %1076 = vmatmul.mubr.bf16.gmra.mxu0 %v521
  %v1077 = vpop.f32.mrf.mxu0
  %v1078 = vadd.f32 %v1034, %v1077
  %v1079 = vpop.f32.mrf.mxu0
  %v1080 = vpop.f32.mrf.mxu0
  %v1081 = vadd.f32 %v1034, %v1080
  %v1082 = vpop.f32.mrf.mxu0
  %1083 = vmatprep.mubr.bf16.mxu0 %v524
  %1084 = vmatmul.mubr.bf16.gmra.mxu0 %v523
  %v1085 = vpop.f32.mrf.mxu0
  %v1086 = vadd.f32 %v1034, %v1085
  %v1087 = vpop.f32.mrf.mxu0
  %v1088 = vpop.f32.mrf.mxu0
  %v1089 = vadd.f32 %v1034, %v1088
  %v1090 = vpop.f32.mrf.mxu0
  %1091 = vmatprep.mubr.bf16.mxu0 %v526
  %1092 = vmatmul.mubr.bf16.gmra.mxu0 %v525
  %v1093 = vpop.f32.mrf.mxu0
  %v1094 = vadd.f32 %v1034, %v1093
  %v1095 = vpop.f32.mrf.mxu0
  %v1096 = vpop.f32.mrf.mxu0
  %v1097 = vadd.f32 %v1034, %v1096
  %v1098 = vpop.f32.mrf.mxu0
  %1099 = vmatprep.mubr.bf16.mxu0 %v528
  %1100 = vmatmul.mubr.bf16.gmra.mxu0 %v527
  %v1101 = vpop.f32.mrf.mxu0
  %v1102 = vadd.f32 %v1034, %v1101
  %v1103 = vpop.f32.mrf.mxu0
  %v1104 = vpop.f32.mrf.mxu0
  %v1105 = vadd.f32 %v1034, %v1104
  %v1106 = vpop.f32.mrf.mxu0
  %1107 = vmatprep.mubr.bf16.mxu0 %v530
  %1108 = vmatmul.mubr.bf16.gmra.mxu0 %v529
  %v1109 = vpop.f32.mrf.mxu0
  %v1110 = vadd.f32 %v1034, %v1109
  %v1111 = vpop.f32.mrf.mxu0
  %v1112 = vpop.f32.mrf.mxu0
  %v1113 = vadd.f32 %v1034, %v1112
  %v1114 = vpop.f32.mrf.mxu0
  %1115 = vmatprep.mubr.bf16.mxu0 %v532
  %1116 = vmatmul.mubr.bf16.gmra.mxu0 %v531
  %v1117 = vpop.f32.mrf.mxu0
  %v1118 = vadd.f32 %v1034, %v1117
  %v1119 = vpop.f32.mrf.mxu0
  %v1120 = vpop.f32.mrf.mxu0
  %v1121 = vadd.f32 %v1034, %v1120
  %v1122 = vpop.f32.mrf.mxu0
  %1123 = vmatprep.mubr.bf16.mxu0 %v534
  %1124 = vmatmul.mubr.bf16.gmra.mxu0 %v533
  %v1125 = vpop.f32.mrf.mxu0
  %v1126 = vadd.f32 %v1034, %v1125
  %v1127 = vpop.f32.mrf.mxu0
  %v1128 = vpop.f32.mrf.mxu0
  %v1129 = vadd.f32 %v1034, %v1128
  %v1130 = vpop.f32.mrf.mxu0
  %1131 = vmatprep.mubr.bf16.mxu0 %v536
  %1132 = vmatmul.mubr.bf16.gmra.mxu0 %v535
  %v1133 = vpop.f32.mrf.mxu0
  %v1134 = vadd.f32 %v1034, %v1133
  %v1135 = vpop.f32.mrf.mxu0
  %v1136 = vpop.f32.mrf.mxu0
  %v1137 = vadd.f32 %v1034, %v1136
  %v1138 = vpop.f32.mrf.mxu0
  %1139 = vmatprep.mubr.bf16.mxu0 %v538
  %1140 = vmatmul.mubr.bf16.gmra.mxu0 %v537
  %v1141 = vpop.f32.mrf.mxu0
  %v1142 = vadd.f32 %v1034, %v1141
  %v1143 = vpop.f32.mrf.mxu0
  %v1144 = vpop.f32.mrf.mxu0
  %v1145 = vadd.f32 %v1034, %v1144
  %v1146 = vpop.f32.mrf.mxu0
  %1147 = vmatprep.mubr.bf16.mxu0 %v540
  %1148 = vmatmul.mubr.bf16.gmra.mxu0 %v539
  %v1149 = vpop.f32.mrf.mxu0
  %v1150 = vadd.f32 %v1034, %v1149
  %v1151 = vpop.f32.mrf.mxu0
  %v1152 = vpop.f32.mrf.mxu0
  %v1153 = vadd.f32 %v1034, %v1152
  %v1154 = vpop.f32.mrf.mxu0
  %1155 = vmatprep.mubr.bf16.mxu0 %v542
  %1156 = vmatmul.mubr.bf16.gmra.mxu0 %v541
  %v1157 = vpop.f32.mrf.mxu0
  %v1158 = vadd.f32 %v1034, %v1157
  %v1159 = vpop.f32.mrf.mxu0
  %v1160 = vpop.f32.mrf.mxu0
  %v1161 = vadd.f32 %v1034, %v1160
  %v1162 = vpop.f32.mrf.mxu0
  %1163 = vmatprep.mubr.bf16.mxu0 %v544
  %1164 = vmatmul.mubr.bf16.gmra.mxu0 %v543
  %v1165 = vpop.f32.mrf.mxu0
  %v1166 = vadd.f32 %v1034, %v1165
  %v1167 = vpop.f32.mrf.mxu0
  %v1168 = vpop.f32.mrf.mxu0
  %v1169 = vadd.f32 %v1034, %v1168
  %v1170 = vpop.f32.mrf.mxu0
  %1171 = vmatprep.mubr.bf16.mxu0 %v546
  %1172 = vmatmul.mubr.bf16.gmra.mxu0 %v545
  %v1173 = vpop.f32.mrf.mxu0
  %v1174 = vadd.f32 %v1034, %v1173
  %v1175 = vpop.f32.mrf.mxu0
  %v1176 = vpop.f32.mrf.mxu0
  %v1177 = vadd.f32 %v1034, %v1176
  %v1178 = vpop.f32.mrf.mxu0
  %1179 = vmatprep.mubr.bf16.mxu0 %v548
  %1180 = vmatmul.mubr.bf16.gmra.mxu0 %v547
  %v1181 = vpop.f32.mrf.mxu0
  %v1182 = vadd.f32 %v1034, %v1181
  %v1183 = vpop.f32.mrf.mxu0
  %v1184 = vpop.f32.mrf.mxu0
  %v1185 = vadd.f32 %v1034, %v1184
  %v1186 = vpop.f32.mrf.mxu0
  %1187 = vmatprep.mubr.bf16.mxu0 %v550
  %1188 = vmatmul.mubr.bf16.gmra.mxu0 %v549
  %v1189 = vpop.f32.mrf.mxu0
  %v1190 = vadd.f32 %v1034, %v1189
  %v1191 = vpop.f32.mrf.mxu0
  %v1192 = vpop.f32.mrf.mxu0
  %v1193 = vadd.f32 %v1034, %v1192
  %v1194 = vpop.f32.mrf.mxu0
  %1195 = vdwg.mxu0
  %v1196 = vmax.f32 %v1070, 0.0
  %v1197 = vmax.f32 %v1073, 0.0
  %v1198 = vmax.f32 %v1078, 0.0
  %v1199 = vmax.f32 %v1081, 0.0
  %v1200 = vmax.f32 %v1086, 0.0
  %v1201 = vmax.f32 %v1089, 0.0
  %v1202 = vmax.f32 %v1094, 0.0
  %v1203 = vmax.f32 %v1097, 0.0
  %v1204 = vmax.f32 %v1102, 0.0
  %v1205 = vmax.f32 %v1105, 0.0
  %v1206 = vmax.f32 %v1110, 0.0
  %v1207 = vmax.f32 %v1113, 0.0
  %v1208 = vmax.f32 %v1118, 0.0
  %v1209 = vmax.f32 %v1121, 0.0
  %v1210 = vmax.f32 %v1126, 0.0
  %v1211 = vmax.f32 %v1129, 0.0
  %v1212 = vmax.f32 %v1134, 0.0
  %v1213 = vmax.f32 %v1137, 0.0
  %v1214 = vmax.f32 %v1142, 0.0
  %v1215 = vmax.f32 %v1145, 0.0
  %v1216 = vmax.f32 %v1150, 0.0
  %v1217 = vmax.f32 %v1153, 0.0
  %v1218 = vmax.f32 %v1158, 0.0
  %v1219 = vmax.f32 %v1161, 0.0
  %v1220 = vmax.f32 %v1166, 0.0
  %v1221 = vmax.f32 %v1169, 0.0
  %v1222 = vmax.f32 %v1174, 0.0
  %v1223 = vmax.f32 %v1177, 0.0
  %v1224 = vmax.f32 %v1182, 0.0
  %v1225 = vmax.f32 %v1185, 0.0
  %v1226 = vmax.f32 %v1190, 0.0
  %v1227 = vmax.f32 %v1193, 0.0
  %v1228 = vpack.c.bf16 %v1197, %v1196
  %v1229 = vpack.c.bf16 %v1199, %v1198
  %v1230 = vpack.c.bf16 %v1201, %v1200
  %v1231 = vpack.c.bf16 %v1203, %v1202
  %v1232 = vpack.c.bf16 %v1205, %v1204
  %v1233 = vpack.c.bf16 %v1207, %v1206
  %v1234 = vpack.c.bf16 %v1209, %v1208
  %v1235 = vpack.c.bf16 %v1211, %v1210
  %v1236 = vpack.c.bf16 %v1213, %v1212
  %v1237 = vpack.c.bf16 %v1215, %v1214
  %v1238 = vpack.c.bf16 %v1217, %v1216
  %v1239 = vpack.c.bf16 %v1219, %v1218
  %v1240 = vpack.c.bf16 %v1221, %v1220
  %v1241 = vpack.c.bf16 %v1223, %v1222
  %v1242 = vpack.c.bf16 %v1225, %v1224
  %v1243 = vpack.c.bf16 %v1227, %v1226
  %v1244 = vld [vmem:[%s3 + $0xa0] sm:$0xf]
  %v1245 = vld [vmem:[%s3 + $0xa8] sm:$0xf]
  %v1246 = vld [vmem:[%s3 + $0xb0] sm:$0xf]
  %v1247 = vld [vmem:[%s3 + $0xb8] sm:$0xf]
  %v1248 = vld [vmem:[%s3 + $0xc0] sm:$0xf]
  %v1249 = vld [vmem:[%s3 + $0xc8] sm:$0xf]
  %v1250 = vld [vmem:[%s3 + $0xd0] sm:$0xf]
  %v1251 = vld [vmem:[%s3 + $0xd8] sm:$0xf]
  %v1260 = vunpack.c.l.b16 %v1244
  %v1261 = vunpack.c.l.b16 %v1245
  %v1262 = vunpack.c.l.b16 %v1246
  %v1263 = vunpack.c.l.b16 %v1247
  %v1264 = vunpack.c.l.b16 %v1248
  %v1265 = vunpack.c.l.b16 %v1249
  %v1266 = vunpack.c.l.b16 %v1250
  %v1267 = vunpack.c.l.b16 %v1251
  %v1268 = vpack.c.b16 %v1261, %v1260
  %v1269 = vpack.c.b16 %v1263, %v1262
  %v1270 = vpack.c.b16 %v1265, %v1264
  %v1271 = vpack.c.b16 %v1267, %v1266
  %vm1276 = vcmask 523264
  %v1278 = vsel %vm1276, %v1228, 0
  %v1281 = vsel %vm1276, %v1229, 0
  %v1284 = vsel %vm1276, %v1230, 0
  %v1287 = vsel %vm1276, %v1231, 0
  %v1290 = vsel %vm1276, %v1232, 0
  %v1293 = vsel %vm1276, %v1233, 0
  %v1296 = vsel %vm1276, %v1234, 0
  %v1299 = vsel %vm1276, %v1235, 0
  %v1302 = vsel %vm1276, %v1236, 0
  %v1305 = vsel %vm1276, %v1237, 0
  %v1308 = vsel %vm1276, %v1238, 0
  %v1311 = vsel %vm1276, %v1239, 0
  %v1314 = vsel %vm1276, %v1240, 0
  %v1317 = vsel %vm1276, %v1241, 0
  %v1320 = vsel %vm1276, %v1242, 0
  %v1323 = vsel %vm1276, %v1243, 0
  %1325 = vmatprep.subr.bf16.mxu0 0
  %1326 = vmatpush1.bf16.msra.mxu0 0
  %1327 = vmatprep.subr.bf16.mxu0 0
  %1328 = vmatpush1.bf16.msra.mxu0 0
  %1329 = vmatprep.subr.bf16.mxu0 0
  %1330 = vmatpush1.bf16.msra.mxu0 0
  %1331 = vmatprep.subr.bf16.mxu0 0
  %1332 = vmatpush1.bf16.msra.mxu0 0
  %1333 = vmatprep.subr.bf16.mxu0 0
  %1334 = vmatpush1.bf16.msra.mxu0 %v1271
  %1335 = vmatprep.subr.bf16.mxu0 0
  %1336 = vmatpush1.bf16.msra.mxu0 %v1270
  %1337 = vmatprep.subr.bf16.mxu0 0
  %1338 = vmatpush1.bf16.msra.mxu0 %v1269
  %1339 = vmatprep.subr.bf16.mxu0 0
  %1340 = vmatpush1.bf16.msra.mxu0 %v1268
  %1341 = vmatprep.subr.bf16.mxu0 0
  %1342 = vmatpush2.bf16.msra.mxu0 0
  %1343 = vmatprep.subr.bf16.mxu0 0
  %1344 = vmatpush2.bf16.msra.mxu0 0
  %1345 = vmatprep.subr.bf16.mxu0 0
  %1346 = vmatpush2.bf16.msra.mxu0 0
  %1347 = vmatprep.subr.bf16.mxu0 0
  %1348 = vmatpush2.bf16.msra.mxu0 0
  %1349 = vmatprep.subr.bf16.mxu0 0
  %1350 = vmatpush2.bf16.msra.mxu0 0
  %1351 = vmatprep.subr.bf16.mxu0 0
  %1352 = vmatpush2.bf16.msra.mxu0 0
  %1353 = vmatprep.subr.bf16.mxu0 0
  %1354 = vmatpush2.bf16.msra.mxu0 0
  %1355 = vmatprep.subr.bf16.mxu0 0
  %1356 = vmatpush2.bf16.msra.mxu0 0
  %1357 = vmatprep.mubr.bf16.mxu0 0
  %1358 = vmatmul.mubr.bf16.gmra.mxu0 %v1278
  %v1359 = vpop.f32.mrf.mxu0
  %v1360 = vadd.f32 0.0, %v1359
  %v1361 = vpop.f32.mrf.mxu0
  %v1362 = vpop.f32.mrf.mxu0
  %v1363 = vadd.f32 0.0, %v1362
  %v1364 = vpop.f32.mrf.mxu0
  %1365 = vmatprep.mubr.bf16.mxu0 0
  %1366 = vmatmul.mubr.bf16.gmra.mxu0 %v1281
  %v1367 = vpop.f32.mrf.mxu0
  %v1368 = vadd.f32 0.0, %v1367
  %v1369 = vpop.f32.mrf.mxu0
  %v1370 = vpop.f32.mrf.mxu0
  %v1371 = vadd.f32 0.0, %v1370
  %v1372 = vpop.f32.mrf.mxu0
  %1373 = vmatprep.mubr.bf16.mxu0 0
  %1374 = vmatmul.mubr.bf16.gmra.mxu0 %v1284
  %v1375 = vpop.f32.mrf.mxu0
  %v1376 = vadd.f32 0.0, %v1375
  %v1377 = vpop.f32.mrf.mxu0
  %v1378 = vpop.f32.mrf.mxu0
  %v1379 = vadd.f32 0.0, %v1378
  %v1380 = vpop.f32.mrf.mxu0
  %1381 = vmatprep.mubr.bf16.mxu0 0
  %1382 = vmatmul.mubr.bf16.gmra.mxu0 %v1287
  %v1383 = vpop.f32.mrf.mxu0
  %v1384 = vadd.f32 0.0, %v1383
  %v1385 = vpop.f32.mrf.mxu0
  %v1386 = vpop.f32.mrf.mxu0
  %v1387 = vadd.f32 0.0, %v1386
  %v1388 = vpop.f32.mrf.mxu0
  %1389 = vmatprep.mubr.bf16.mxu0 0
  %1390 = vmatmul.mubr.bf16.gmra.mxu0 %v1290
  %v1391 = vpop.f32.mrf.mxu0
  %v1392 = vadd.f32 0.0, %v1391
  %v1393 = vpop.f32.mrf.mxu0
  %v1394 = vpop.f32.mrf.mxu0
  %v1395 = vadd.f32 0.0, %v1394
  %v1396 = vpop.f32.mrf.mxu0
  %1397 = vmatprep.mubr.bf16.mxu0 0
  %1398 = vmatmul.mubr.bf16.gmra.mxu0 %v1293
  %v1399 = vpop.f32.mrf.mxu0
  %v1400 = vadd.f32 0.0, %v1399
  %v1401 = vpop.f32.mrf.mxu0
  %v1402 = vpop.f32.mrf.mxu0
  %v1403 = vadd.f32 0.0, %v1402
  %v1404 = vpop.f32.mrf.mxu0
  %1405 = vmatprep.mubr.bf16.mxu0 0
  %1406 = vmatmul.mubr.bf16.gmra.mxu0 %v1296
  %v1407 = vpop.f32.mrf.mxu0
  %v1408 = vadd.f32 0.0, %v1407
  %v1409 = vpop.f32.mrf.mxu0
  %v1410 = vpop.f32.mrf.mxu0
  %v1411 = vadd.f32 0.0, %v1410
  %v1412 = vpop.f32.mrf.mxu0
  %1413 = vmatprep.mubr.bf16.mxu0 0
  %1414 = vmatmul.mubr.bf16.gmra.mxu0 %v1299
  %v1415 = vpop.f32.mrf.mxu0
  %v1416 = vadd.f32 0.0, %v1415
  %v1417 = vpop.f32.mrf.mxu0
  %v1418 = vpop.f32.mrf.mxu0
  %v1419 = vadd.f32 0.0, %v1418
  %v1420 = vpop.f32.mrf.mxu0
  %1421 = vmatprep.mubr.bf16.mxu0 0
  %1422 = vmatmul.mubr.bf16.gmra.mxu0 %v1302
  %v1423 = vpop.f32.mrf.mxu0
  %v1424 = vadd.f32 0.0, %v1423
  %v1425 = vpop.f32.mrf.mxu0
  %v1426 = vpop.f32.mrf.mxu0
  %v1427 = vadd.f32 0.0, %v1426
  %v1428 = vpop.f32.mrf.mxu0
  %1429 = vmatprep.mubr.bf16.mxu0 0
  %1430 = vmatmul.mubr.bf16.gmra.mxu0 %v1305
  %v1431 = vpop.f32.mrf.mxu0
  %v1432 = vadd.f32 0.0, %v1431
  %v1433 = vpop.f32.mrf.mxu0
  %v1434 = vpop.f32.mrf.mxu0
  %v1435 = vadd.f32 0.0, %v1434
  %v1436 = vpop.f32.mrf.mxu0
  %1437 = vmatprep.mubr.bf16.mxu0 0
  %1438 = vmatmul.mubr.bf16.gmra.mxu0 %v1308
  %v1439 = vpop.f32.mrf.mxu0
  %v1440 = vadd.f32 0.0, %v1439
  %v1441 = vpop.f32.mrf.mxu0
  %v1442 = vpop.f32.mrf.mxu0
  %v1443 = vadd.f32 0.0, %v1442
  %v1444 = vpop.f32.mrf.mxu0
  %1445 = vmatprep.mubr.bf16.mxu0 0
  %1446 = vmatmul.mubr.bf16.gmra.mxu0 %v1311
  %v1447 = vpop.f32.mrf.mxu0
  %v1448 = vadd.f32 0.0, %v1447
  %v1449 = vpop.f32.mrf.mxu0
  %v1450 = vpop.f32.mrf.mxu0
  %v1451 = vadd.f32 0.0, %v1450
  %v1452 = vpop.f32.mrf.mxu0
  %1453 = vmatprep.mubr.bf16.mxu0 0
  %1454 = vmatmul.mubr.bf16.gmra.mxu0 %v1314
  %v1455 = vpop.f32.mrf.mxu0
  %v1456 = vadd.f32 0.0, %v1455
  %v1457 = vpop.f32.mrf.mxu0
  %v1458 = vpop.f32.mrf.mxu0
  %v1459 = vadd.f32 0.0, %v1458
  %v1460 = vpop.f32.mrf.mxu0
  %1461 = vmatprep.mubr.bf16.mxu0 0
  %1462 = vmatmul.mubr.bf16.gmra.mxu0 %v1317
  %v1463 = vpop.f32.mrf.mxu0
  %v1464 = vadd.f32 0.0, %v1463
  %v1465 = vpop.f32.mrf.mxu0
  %v1466 = vpop.f32.mrf.mxu0
  %v1467 = vadd.f32 0.0, %v1466
  %v1468 = vpop.f32.mrf.mxu0
  %1469 = vmatprep.mubr.bf16.mxu0 0
  %1470 = vmatmul.mubr.bf16.gmra.mxu0 %v1320
  %v1471 = vpop.f32.mrf.mxu0
  %v1472 = vadd.f32 0.0, %v1471
  %v1473 = vpop.f32.mrf.mxu0
  %v1474 = vpop.f32.mrf.mxu0
  %v1475 = vadd.f32 0.0, %v1474
  %v1476 = vpop.f32.mrf.mxu0
  %1477 = vmatprep.mubr.bf16.mxu0 0
  %1478 = vmatmul.mubr.bf16.gmra.mxu0 %v1323
  %v1479 = vpop.f32.mrf.mxu0
  %v1480 = vadd.f32 0.0, %v1479
  %v1481 = vpop.f32.mrf.mxu0
  %v1482 = vpop.f32.mrf.mxu0
  %v1483 = vadd.f32 0.0, %v1482
  %v1484 = vpop.f32.mrf.mxu0
  %1485 = vdwg.mxu0
  %v1486 = vpack.c.bf16 %v1363, %v1360
  %v1487 = vpack.c.bf16 %v1371, %v1368
  %v1488 = vpack.c.bf16 %v1379, %v1376
  %v1489 = vpack.c.bf16 %v1387, %v1384
  %v1490 = vpack.c.bf16 %v1395, %v1392
  %v1491 = vpack.c.bf16 %v1403, %v1400
  %v1492 = vpack.c.bf16 %v1411, %v1408
  %v1493 = vpack.c.bf16 %v1419, %v1416
  %v1494 = vpack.c.bf16 %v1427, %v1424
  %v1495 = vpack.c.bf16 %v1435, %v1432
  %v1496 = vpack.c.bf16 %v1443, %v1440
  %v1497 = vpack.c.bf16 %v1451, %v1448
  %v1498 = vpack.c.bf16 %v1459, %v1456
  %v1499 = vpack.c.bf16 %v1467, %v1464
  %v1500 = vpack.c.bf16 %v1475, %v1472
  %v1501 = vpack.c.bf16 %v1483, %v1480
  %v1502 = vld [vmem:[%s4 + $0x2] ss:$0 sm:$0xff]
  %1503 = vmatprep.subr.bf16.mxu0 0
  %1504 = vmatpush1.bf16.msra.mxu0 %v1493
  %1505 = vmatprep.subr.bf16.mxu0 0
  %1506 = vmatpush1.bf16.msra.mxu0 %v1492
  %1507 = vmatprep.subr.bf16.mxu0 0
  %1508 = vmatpush1.bf16.msra.mxu0 %v1491
  %1509 = vmatprep.subr.bf16.mxu0 0
  %1510 = vmatpush1.bf16.msra.mxu0 %v1490
  %1511 = vmatprep.subr.bf16.mxu0 0
  %1512 = vmatpush1.bf16.msra.mxu0 %v1489
  %1513 = vmatprep.subr.bf16.mxu0 0
  %1514 = vmatpush1.bf16.msra.mxu0 %v1488
  %1515 = vmatprep.subr.bf16.mxu0 0
  %1516 = vmatpush1.bf16.msra.mxu0 %v1487
  %1517 = vmatprep.subr.bf16.mxu0 0
  %1518 = vmatpush1.bf16.msra.mxu0 %v1486
  %1519 = vmatprep.subr.bf16.mxu0 0
  %1520 = vmatpush2.bf16.msra.mxu0 %v1501
  %1521 = vmatprep.subr.bf16.mxu0 0
  %1522 = vmatpush2.bf16.msra.mxu0 %v1500
  %1523 = vmatprep.subr.bf16.mxu0 0
  %1524 = vmatpush2.bf16.msra.mxu0 %v1499
  %1525 = vmatprep.subr.bf16.mxu0 0
  %1526 = vmatpush2.bf16.msra.mxu0 %v1498
  %1527 = vmatprep.subr.bf16.mxu0 0
  %1528 = vmatpush2.bf16.msra.mxu0 %v1497
  %1529 = vmatprep.subr.bf16.mxu0 0
  %1530 = vmatpush2.bf16.msra.mxu0 %v1496
  %1531 = vmatprep.subr.bf16.mxu0 0
  %1532 = vmatpush2.bf16.msra.mxu0 %v1495
  %1533 = vmatprep.subr.bf16.mxu0 0
  %1534 = vmatpush2.bf16.msra.mxu0 %v1494
  %1535 = vmatprep.mubr.bf16.mxu0 %v520
  %1536 = vmatmul.mubr.bf16.gmra.mxu0 %v519
  %v1537 = vpop.f32.mrf.mxu0
  %v1538 = vadd.f32 %v1502, %v1537
  %v1539 = vpop.f32.mrf.mxu0
  %v1540 = vpop.f32.mrf.mxu0
  %v1541 = vadd.f32 %v1502, %v1540
  %v1542 = vpop.f32.mrf.mxu0
  %1543 = vmatprep.mubr.bf16.mxu0 %v522
  %1544 = vmatmul.mubr.bf16.gmra.mxu0 %v521
  %v1545 = vpop.f32.mrf.mxu0
  %v1546 = vadd.f32 %v1502, %v1545
  %v1547 = vpop.f32.mrf.mxu0
  %v1548 = vpop.f32.mrf.mxu0
  %v1549 = vadd.f32 %v1502, %v1548
  %v1550 = vpop.f32.mrf.mxu0
  %1551 = vmatprep.mubr.bf16.mxu0 %v524
  %1552 = vmatmul.mubr.bf16.gmra.mxu0 %v523
  %v1553 = vpop.f32.mrf.mxu0
  %v1554 = vadd.f32 %v1502, %v1553
  %v1555 = vpop.f32.mrf.mxu0
  %v1556 = vpop.f32.mrf.mxu0
  %v1557 = vadd.f32 %v1502, %v1556
  %v1558 = vpop.f32.mrf.mxu0
  %1559 = vmatprep.mubr.bf16.mxu0 %v526
  %1560 = vmatmul.mubr.bf16.gmra.mxu0 %v525
  %v1561 = vpop.f32.mrf.mxu0
  %v1562 = vadd.f32 %v1502, %v1561
  %v1563 = vpop.f32.mrf.mxu0
  %v1564 = vpop.f32.mrf.mxu0
  %v1565 = vadd.f32 %v1502, %v1564
  %v1566 = vpop.f32.mrf.mxu0
  %1567 = vmatprep.mubr.bf16.mxu0 %v528
  %1568 = vmatmul.mubr.bf16.gmra.mxu0 %v527
  %v1569 = vpop.f32.mrf.mxu0
  %v1570 = vadd.f32 %v1502, %v1569
  %v1571 = vpop.f32.mrf.mxu0
  %v1572 = vpop.f32.mrf.mxu0
  %v1573 = vadd.f32 %v1502, %v1572
  %v1574 = vpop.f32.mrf.mxu0
  %1575 = vmatprep.mubr.bf16.mxu0 %v530
  %1576 = vmatmul.mubr.bf16.gmra.mxu0 %v529
  %v1577 = vpop.f32.mrf.mxu0
  %v1578 = vadd.f32 %v1502, %v1577
  %v1579 = vpop.f32.mrf.mxu0
  %v1580 = vpop.f32.mrf.mxu0
  %v1581 = vadd.f32 %v1502, %v1580
  %v1582 = vpop.f32.mrf.mxu0
  %1583 = vmatprep.mubr.bf16.mxu0 %v532
  %1584 = vmatmul.mubr.bf16.gmra.mxu0 %v531
  %v1585 = vpop.f32.mrf.mxu0
  %v1586 = vadd.f32 %v1502, %v1585
  %v1587 = vpop.f32.mrf.mxu0
  %v1588 = vpop.f32.mrf.mxu0
  %v1589 = vadd.f32 %v1502, %v1588
  %v1590 = vpop.f32.mrf.mxu0
  %1591 = vmatprep.mubr.bf16.mxu0 %v534
  %1592 = vmatmul.mubr.bf16.gmra.mxu0 %v533
  %v1593 = vpop.f32.mrf.mxu0
  %v1594 = vadd.f32 %v1502, %v1593
  %v1595 = vpop.f32.mrf.mxu0
  %v1596 = vpop.f32.mrf.mxu0
  %v1597 = vadd.f32 %v1502, %v1596
  %v1598 = vpop.f32.mrf.mxu0
  %1599 = vmatprep.mubr.bf16.mxu0 %v536
  %1600 = vmatmul.mubr.bf16.gmra.mxu0 %v535
  %v1601 = vpop.f32.mrf.mxu0
  %v1602 = vadd.f32 %v1502, %v1601
  %v1603 = vpop.f32.mrf.mxu0
  %v1604 = vpop.f32.mrf.mxu0
  %v1605 = vadd.f32 %v1502, %v1604
  %v1606 = vpop.f32.mrf.mxu0
  %1607 = vmatprep.mubr.bf16.mxu0 %v538
  %1608 = vmatmul.mubr.bf16.gmra.mxu0 %v537
  %v1609 = vpop.f32.mrf.mxu0
  %v1610 = vadd.f32 %v1502, %v1609
  %v1611 = vpop.f32.mrf.mxu0
  %v1612 = vpop.f32.mrf.mxu0
  %v1613 = vadd.f32 %v1502, %v1612
  %v1614 = vpop.f32.mrf.mxu0
  %1615 = vmatprep.mubr.bf16.mxu0 %v540
  %1616 = vmatmul.mubr.bf16.gmra.mxu0 %v539
  %v1617 = vpop.f32.mrf.mxu0
  %v1618 = vadd.f32 %v1502, %v1617
  %v1619 = vpop.f32.mrf.mxu0
  %v1620 = vpop.f32.mrf.mxu0
  %v1621 = vadd.f32 %v1502, %v1620
  %v1622 = vpop.f32.mrf.mxu0
  %1623 = vmatprep.mubr.bf16.mxu0 %v542
  %1624 = vmatmul.mubr.bf16.gmra.mxu0 %v541
  %v1625 = vpop.f32.mrf.mxu0
  %v1626 = vadd.f32 %v1502, %v1625
  %v1627 = vpop.f32.mrf.mxu0
  %v1628 = vpop.f32.mrf.mxu0
  %v1629 = vadd.f32 %v1502, %v1628
  %v1630 = vpop.f32.mrf.mxu0
  %1631 = vmatprep.mubr.bf16.mxu0 %v544
  %1632 = vmatmul.mubr.bf16.gmra.mxu0 %v543
  %v1633 = vpop.f32.mrf.mxu0
  %v1634 = vadd.f32 %v1502, %v1633
  %v1635 = vpop.f32.mrf.mxu0
  %v1636 = vpop.f32.mrf.mxu0
  %v1637 = vadd.f32 %v1502, %v1636
  %v1638 = vpop.f32.mrf.mxu0
  %1639 = vmatprep.mubr.bf16.mxu0 %v546
  %1640 = vmatmul.mubr.bf16.gmra.mxu0 %v545
  %v1641 = vpop.f32.mrf.mxu0
  %v1642 = vadd.f32 %v1502, %v1641
  %v1643 = vpop.f32.mrf.mxu0
  %v1644 = vpop.f32.mrf.mxu0
  %v1645 = vadd.f32 %v1502, %v1644
  %v1646 = vpop.f32.mrf.mxu0
  %1647 = vmatprep.mubr.bf16.mxu0 %v548
  %1648 = vmatmul.mubr.bf16.gmra.mxu0 %v547
  %v1649 = vpop.f32.mrf.mxu0
  %v1650 = vadd.f32 %v1502, %v1649
  %v1651 = vpop.f32.mrf.mxu0
  %v1652 = vpop.f32.mrf.mxu0
  %v1653 = vadd.f32 %v1502, %v1652
  %v1654 = vpop.f32.mrf.mxu0
  %1655 = vmatprep.mubr.bf16.mxu0 %v550
  %1656 = vmatmul.mubr.bf16.gmra.mxu0 %v549
  %v1657 = vpop.f32.mrf.mxu0
  %v1658 = vadd.f32 %v1502, %v1657
  %v1659 = vpop.f32.mrf.mxu0
  %v1660 = vpop.f32.mrf.mxu0
  %v1661 = vadd.f32 %v1502, %v1660
  %v1662 = vpop.f32.mrf.mxu0
  %1663 = vdwg.mxu0
  %v1664 = vmax.f32 %v1538, 0.0
  %v1665 = vmax.f32 %v1541, 0.0
  %v1666 = vmax.f32 %v1546, 0.0
  %v1667 = vmax.f32 %v1549, 0.0
  %v1668 = vmax.f32 %v1554, 0.0
  %v1669 = vmax.f32 %v1557, 0.0
  %v1670 = vmax.f32 %v1562, 0.0
  %v1671 = vmax.f32 %v1565, 0.0
  %v1672 = vmax.f32 %v1570, 0.0
  %v1673 = vmax.f32 %v1573, 0.0
  %v1674 = vmax.f32 %v1578, 0.0
  %v1675 = vmax.f32 %v1581, 0.0
  %v1676 = vmax.f32 %v1586, 0.0
  %v1677 = vmax.f32 %v1589, 0.0
  %v1678 = vmax.f32 %v1594, 0.0
  %v1679 = vmax.f32 %v1597, 0.0
  %v1680 = vmax.f32 %v1602, 0.0
  %v1681 = vmax.f32 %v1605, 0.0
  %v1682 = vmax.f32 %v1610, 0.0
  %v1683 = vmax.f32 %v1613, 0.0
  %v1684 = vmax.f32 %v1618, 0.0
  %v1685 = vmax.f32 %v1621, 0.0
  %v1686 = vmax.f32 %v1626, 0.0
  %v1687 = vmax.f32 %v1629, 0.0
  %v1688 = vmax.f32 %v1634, 0.0
  %v1689 = vmax.f32 %v1637, 0.0
  %v1690 = vmax.f32 %v1642, 0.0
  %v1691 = vmax.f32 %v1645, 0.0
  %v1692 = vmax.f32 %v1650, 0.0
  %v1693 = vmax.f32 %v1653, 0.0
  %v1694 = vmax.f32 %v1658, 0.0
  %v1695 = vmax.f32 %v1661, 0.0
  %v1696 = vpack.c.bf16 %v1665, %v1664
  %v1697 = vpack.c.bf16 %v1667, %v1666
  %v1698 = vpack.c.bf16 %v1669, %v1668
  %v1699 = vpack.c.bf16 %v1671, %v1670
  %v1700 = vpack.c.bf16 %v1673, %v1672
  %v1701 = vpack.c.bf16 %v1675, %v1674
  %v1702 = vpack.c.bf16 %v1677, %v1676
  %v1703 = vpack.c.bf16 %v1679, %v1678
  %v1704 = vpack.c.bf16 %v1681, %v1680
  %v1705 = vpack.c.bf16 %v1683, %v1682
  %v1706 = vpack.c.bf16 %v1685, %v1684
  %v1707 = vpack.c.bf16 %v1687, %v1686
  %v1708 = vpack.c.bf16 %v1689, %v1688
  %v1709 = vpack.c.bf16 %v1691, %v1690
  %v1710 = vpack.c.bf16 %v1693, %v1692
  %v1711 = vpack.c.bf16 %v1695, %v1694
  %v1712 = vld [vmem:[%s3 + $0xe0] sm:$0xff]
  %v1713 = vld [vmem:[%s3 + $0xe8] sm:$0xff]
  %v1714 = vld [vmem:[%s3 + $0xf0] sm:$0xff]
  %v1715 = vld [vmem:[%s3 + $0xf8] sm:$0xff]
  %v1716 = vld [vmem:[%s3 + $0x100] sm:$0xff]
  %v1717 = vld [vmem:[%s3 + $0x108] sm:$0xff]
  %v1718 = vld [vmem:[%s3 + $0x110] sm:$0xff]
  %v1719 = vld [vmem:[%s3 + $0x118] sm:$0xff]
  %v1720 = vld [vmem:[%s3 + $0x120] sm:$0xff]
  %v1721 = vld [vmem:[%s3 + $0x128] sm:$0xff]
  %v1722 = vld [vmem:[%s3 + $0x130] sm:$0xff]
  %v1723 = vld [vmem:[%s3 + $0x138] sm:$0xff]
  %v1724 = vld [vmem:[%s3 + $0x140] sm:$0xff]
  %v1725 = vld [vmem:[%s3 + $0x148] sm:$0xff]
  %v1726 = vld [vmem:[%s3 + $0x150] sm:$0xff]
  %v1727 = vld [vmem:[%s3 + $0x158] sm:$0xff]
  %v1744 = vunpack.c.l.b16 %v1712
  %v1745 = vunpack.c.h.b16 %v1712
  %v1746 = vunpack.c.l.b16 %v1713
  %v1747 = vunpack.c.h.b16 %v1713
  %v1748 = vunpack.c.l.b16 %v1714
  %v1749 = vunpack.c.h.b16 %v1714
  %v1750 = vunpack.c.l.b16 %v1715
  %v1751 = vunpack.c.h.b16 %v1715
  %v1752 = vunpack.c.l.b16 %v1716
  %v1753 = vunpack.c.h.b16 %v1716
  %v1754 = vunpack.c.l.b16 %v1717
  %v1755 = vunpack.c.h.b16 %v1717
  %v1756 = vunpack.c.l.b16 %v1718
  %v1757 = vunpack.c.h.b16 %v1718
  %v1758 = vunpack.c.l.b16 %v1719
  %v1759 = vunpack.c.h.b16 %v1719
  %v1760 = vunpack.c.l.b16 %v1720
  %v1761 = vunpack.c.h.b16 %v1720
  %v1762 = vunpack.c.l.b16 %v1721
  %v1763 = vunpack.c.h.b16 %v1721
  %v1764 = vunpack.c.l.b16 %v1722
  %v1765 = vunpack.c.h.b16 %v1722
  %v1766 = vunpack.c.l.b16 %v1723
  %v1767 = vunpack.c.h.b16 %v1723
  %v1768 = vunpack.c.l.b16 %v1724
  %v1769 = vunpack.c.h.b16 %v1724
  %v1770 = vunpack.c.l.b16 %v1725
  %v1771 = vunpack.c.h.b16 %v1725
  %v1772 = vunpack.c.l.b16 %v1726
  %v1773 = vunpack.c.h.b16 %v1726
  %v1774 = vunpack.c.l.b16 %v1727
  %v1775 = vunpack.c.h.b16 %v1727
  %v1776 = vpack.c.b16 %v1746, %v1744
  %v1777 = vpack.c.b16 %v1747, %v1745
  %v1778 = vpack.c.b16 %v1750, %v1748
  %v1779 = vpack.c.b16 %v1751, %v1749
  %v1780 = vpack.c.b16 %v1754, %v1752
  %v1781 = vpack.c.b16 %v1755, %v1753
  %v1782 = vpack.c.b16 %v1758, %v1756
  %v1783 = vpack.c.b16 %v1759, %v1757
  %v1784 = vpack.c.b16 %v1762, %v1760
  %v1785 = vpack.c.b16 %v1763, %v1761
  %v1786 = vpack.c.b16 %v1766, %v1764
  %v1787 = vpack.c.b16 %v1767, %v1765
  %v1788 = vpack.c.b16 %v1770, %v1768
  %v1789 = vpack.c.b16 %v1771, %v1769
  %v1790 = vpack.c.b16 %v1774, %v1772
  %v1791 = vpack.c.b16 %v1775, %v1773
  %1808 = vmatprep.subr.bf16.mxu0 %v1791
  %1809 = vmatpush1.bf16.msra.mxu0 %v1790
  %1810 = vmatprep.subr.bf16.mxu0 %v1789
  %1811 = vmatpush1.bf16.msra.mxu0 %v1788
  %1812 = vmatprep.subr.bf16.mxu0 %v1787
  %1813 = vmatpush1.bf16.msra.mxu0 %v1786
  %1814 = vmatprep.subr.bf16.mxu0 %v1785
  %1815 = vmatpush1.bf16.msra.mxu0 %v1784
  %1816 = vmatprep.subr.bf16.mxu0 %v1783
  %1817 = vmatpush1.bf16.msra.mxu0 %v1782
  %1818 = vmatprep.subr.bf16.mxu0 %v1781
  %1819 = vmatpush1.bf16.msra.mxu0 %v1780
  %1820 = vmatprep.subr.bf16.mxu0 %v1779
  %1821 = vmatpush1.bf16.msra.mxu0 %v1778
  %1822 = vmatprep.subr.bf16.mxu0 %v1777
  %1823 = vmatpush1.bf16.msra.mxu0 %v1776
  %1824 = vmatprep.subr.bf16.mxu0 0
  %1825 = vmatpush2.bf16.msra.mxu0 0
  %1826 = vmatprep.subr.bf16.mxu0 0
  %1827 = vmatpush2.bf16.msra.mxu0 0
  %1828 = vmatprep.subr.bf16.mxu0 0
  %1829 = vmatpush2.bf16.msra.mxu0 0
  %1830 = vmatprep.subr.bf16.mxu0 0
  %1831 = vmatpush2.bf16.msra.mxu0 0
  %1832 = vmatprep.subr.bf16.mxu0 0
  %1833 = vmatpush2.bf16.msra.mxu0 0
  %1834 = vmatprep.subr.bf16.mxu0 0
  %1835 = vmatpush2.bf16.msra.mxu0 0
  %1836 = vmatprep.subr.bf16.mxu0 0
  %1837 = vmatpush2.bf16.msra.mxu0 0
  %1838 = vmatprep.subr.bf16.mxu0 0
  %1839 = vmatpush2.bf16.msra.mxu0 0
  %1840 = vmatprep.mubr.bf16.mxu0 0
  %1841 = vmatmul.mubr.bf16.gmra.mxu0 %v1696
  %v1842 = vpop.f32.mrf.mxu0
  %v1843 = vadd.f32 0.0, %v1842
  %v1844 = vpop.f32.mrf.mxu0
  %v1845 = vadd.f32 0.0, %v1844
  %v1846 = vpop.f32.mrf.mxu0
  %v1847 = vadd.f32 0.0, %v1846
  %v1848 = vpop.f32.mrf.mxu0
  %v1849 = vadd.f32 0.0, %v1848
  %1850 = vmatprep.mubr.bf16.mxu0 0
  %1851 = vmatmul.mubr.bf16.gmra.mxu0 %v1697
  %v1852 = vpop.f32.mrf.mxu0
  %v1853 = vadd.f32 0.0, %v1852
  %v1854 = vpop.f32.mrf.mxu0
  %v1855 = vadd.f32 0.0, %v1854
  %v1856 = vpop.f32.mrf.mxu0
  %v1857 = vadd.f32 0.0, %v1856
  %v1858 = vpop.f32.mrf.mxu0
  %v1859 = vadd.f32 0.0, %v1858
  %1860 = vmatprep.mubr.bf16.mxu0 0
  %1861 = vmatmul.mubr.bf16.gmra.mxu0 %v1698
  %v1862 = vpop.f32.mrf.mxu0
  %v1863 = vadd.f32 0.0, %v1862
  %v1864 = vpop.f32.mrf.mxu0
  %v1865 = vadd.f32 0.0, %v1864
  %v1866 = vpop.f32.mrf.mxu0
  %v1867 = vadd.f32 0.0, %v1866
  %v1868 = vpop.f32.mrf.mxu0
  %v1869 = vadd.f32 0.0, %v1868
  %1870 = vmatprep.mubr.bf16.mxu0 0
  %1871 = vmatmul.mubr.bf16.gmra.mxu0 %v1699
  %v1872 = vpop.f32.mrf.mxu0
  %v1873 = vadd.f32 0.0, %v1872
  %v1874 = vpop.f32.mrf.mxu0
  %v1875 = vadd.f32 0.0, %v1874
  %v1876 = vpop.f32.mrf.mxu0
  %v1877 = vadd.f32 0.0, %v1876
  %v1878 = vpop.f32.mrf.mxu0
  %v1879 = vadd.f32 0.0, %v1878
  %1880 = vmatprep.mubr.bf16.mxu0 0
  %1881 = vmatmul.mubr.bf16.gmra.mxu0 %v1700
  %v1882 = vpop.f32.mrf.mxu0
  %v1883 = vadd.f32 0.0, %v1882
  %v1884 = vpop.f32.mrf.mxu0
  %v1885 = vadd.f32 0.0, %v1884
  %v1886 = vpop.f32.mrf.mxu0
  %v1887 = vadd.f32 0.0, %v1886
  %v1888 = vpop.f32.mrf.mxu0
  %v1889 = vadd.f32 0.0, %v1888
  %1890 = vmatprep.mubr.bf16.mxu0 0
  %1891 = vmatmul.mubr.bf16.gmra.mxu0 %v1701
  %v1892 = vpop.f32.mrf.mxu0
  %v1893 = vadd.f32 0.0, %v1892
  %v1894 = vpop.f32.mrf.mxu0
  %v1895 = vadd.f32 0.0, %v1894
  %v1896 = vpop.f32.mrf.mxu0
  %v1897 = vadd.f32 0.0, %v1896
  %v1898 = vpop.f32.mrf.mxu0
  %v1899 = vadd.f32 0.0, %v1898
  %1900 = vmatprep.mubr.bf16.mxu0 0
  %1901 = vmatmul.mubr.bf16.gmra.mxu0 %v1702
  %v1902 = vpop.f32.mrf.mxu0
  %v1903 = vadd.f32 0.0, %v1902
  %v1904 = vpop.f32.mrf.mxu0
  %v1905 = vadd.f32 0.0, %v1904
  %v1906 = vpop.f32.mrf.mxu0
  %v1907 = vadd.f32 0.0, %v1906
  %v1908 = vpop.f32.mrf.mxu0
  %v1909 = vadd.f32 0.0, %v1908
  %1910 = vmatprep.mubr.bf16.mxu0 0
  %1911 = vmatmul.mubr.bf16.gmra.mxu0 %v1703
  %v1912 = vpop.f32.mrf.mxu0
  %v1913 = vadd.f32 0.0, %v1912
  %v1914 = vpop.f32.mrf.mxu0
  %v1915 = vadd.f32 0.0, %v1914
  %v1916 = vpop.f32.mrf.mxu0
  %v1917 = vadd.f32 0.0, %v1916
  %v1918 = vpop.f32.mrf.mxu0
  %v1919 = vadd.f32 0.0, %v1918
  %1920 = vmatprep.mubr.bf16.mxu0 0
  %1921 = vmatmul.mubr.bf16.gmra.mxu0 %v1704
  %v1922 = vpop.f32.mrf.mxu0
  %v1923 = vadd.f32 0.0, %v1922
  %v1924 = vpop.f32.mrf.mxu0
  %v1925 = vadd.f32 0.0, %v1924
  %v1926 = vpop.f32.mrf.mxu0
  %v1927 = vadd.f32 0.0, %v1926
  %v1928 = vpop.f32.mrf.mxu0
  %v1929 = vadd.f32 0.0, %v1928
  %1930 = vmatprep.mubr.bf16.mxu0 0
  %1931 = vmatmul.mubr.bf16.gmra.mxu0 %v1705
  %v1932 = vpop.f32.mrf.mxu0
  %v1933 = vadd.f32 0.0, %v1932
  %v1934 = vpop.f32.mrf.mxu0
  %v1935 = vadd.f32 0.0, %v1934
  %v1936 = vpop.f32.mrf.mxu0
  %v1937 = vadd.f32 0.0, %v1936
  %v1938 = vpop.f32.mrf.mxu0
  %v1939 = vadd.f32 0.0, %v1938
  %1940 = vmatprep.mubr.bf16.mxu0 0
  %1941 = vmatmul.mubr.bf16.gmra.mxu0 %v1706
  %v1942 = vpop.f32.mrf.mxu0
  %v1943 = vadd.f32 0.0, %v1942
  %v1944 = vpop.f32.mrf.mxu0
  %v1945 = vadd.f32 0.0, %v1944
  %v1946 = vpop.f32.mrf.mxu0
  %v1947 = vadd.f32 0.0, %v1946
  %v1948 = vpop.f32.mrf.mxu0
  %v1949 = vadd.f32 0.0, %v1948
  %1950 = vmatprep.mubr.bf16.mxu0 0
  %1951 = vmatmul.mubr.bf16.gmra.mxu0 %v1707
  %v1952 = vpop.f32.mrf.mxu0
  %v1953 = vadd.f32 0.0, %v1952
  %v1954 = vpop.f32.mrf.mxu0
  %v1955 = vadd.f32 0.0, %v1954
  %v1956 = vpop.f32.mrf.mxu0
  %v1957 = vadd.f32 0.0, %v1956
  %v1958 = vpop.f32.mrf.mxu0
  %v1959 = vadd.f32 0.0, %v1958
  %1960 = vmatprep.mubr.bf16.mxu0 0
  %1961 = vmatmul.mubr.bf16.gmra.mxu0 %v1708
  %v1962 = vpop.f32.mrf.mxu0
  %v1963 = vadd.f32 0.0, %v1962
  %v1964 = vpop.f32.mrf.mxu0
  %v1965 = vadd.f32 0.0, %v1964
  %v1966 = vpop.f32.mrf.mxu0
  %v1967 = vadd.f32 0.0, %v1966
  %v1968 = vpop.f32.mrf.mxu0
  %v1969 = vadd.f32 0.0, %v1968
  %1970 = vmatprep.mubr.bf16.mxu0 0
  %1971 = vmatmul.mubr.bf16.gmra.mxu0 %v1709
  %v1972 = vpop.f32.mrf.mxu0
  %v1973 = vadd.f32 0.0, %v1972
  %v1974 = vpop.f32.mrf.mxu0
  %v1975 = vadd.f32 0.0, %v1974
  %v1976 = vpop.f32.mrf.mxu0
  %v1977 = vadd.f32 0.0, %v1976
  %v1978 = vpop.f32.mrf.mxu0
  %v1979 = vadd.f32 0.0, %v1978
  %1980 = vmatprep.mubr.bf16.mxu0 0
  %1981 = vmatmul.mubr.bf16.gmra.mxu0 %v1710
  %v1982 = vpop.f32.mrf.mxu0
  %v1983 = vadd.f32 0.0, %v1982
  %v1984 = vpop.f32.mrf.mxu0
  %v1985 = vadd.f32 0.0, %v1984
  %v1986 = vpop.f32.mrf.mxu0
  %v1987 = vadd.f32 0.0, %v1986
  %v1988 = vpop.f32.mrf.mxu0
  %v1989 = vadd.f32 0.0, %v1988
  %1990 = vmatprep.mubr.bf16.mxu0 0
  %1991 = vmatmul.mubr.bf16.gmra.mxu0 %v1711
  %v1992 = vpop.f32.mrf.mxu0
  %v1993 = vadd.f32 0.0, %v1992
  %v1994 = vpop.f32.mrf.mxu0
  %v1995 = vadd.f32 0.0, %v1994
  %v1996 = vpop.f32.mrf.mxu0
  %v1997 = vadd.f32 0.0, %v1996
  %v1998 = vpop.f32.mrf.mxu0
  %v1999 = vadd.f32 0.0, %v1998
  %2000 = vdwg.mxu0
  %v2001 = vpack.c.bf16 %v1847, %v1843
  %v2002 = vpack.c.bf16 %v1849, %v1845
  %v2003 = vpack.c.bf16 %v1857, %v1853
  %v2004 = vpack.c.bf16 %v1859, %v1855
  %v2005 = vpack.c.bf16 %v1867, %v1863
  %v2006 = vpack.c.bf16 %v1869, %v1865
  %v2007 = vpack.c.bf16 %v1877, %v1873
  %v2008 = vpack.c.bf16 %v1879, %v1875
  %v2009 = vpack.c.bf16 %v1887, %v1883
  %v2010 = vpack.c.bf16 %v1889, %v1885
  %v2011 = vpack.c.bf16 %v1897, %v1893
  %v2012 = vpack.c.bf16 %v1899, %v1895
  %v2013 = vpack.c.bf16 %v1907, %v1903
  %v2014 = vpack.c.bf16 %v1909, %v1905
  %v2015 = vpack.c.bf16 %v1917, %v1913
  %v2016 = vpack.c.bf16 %v1919, %v1915
  %v2017 = vpack.c.bf16 %v1927, %v1923
  %v2018 = vpack.c.bf16 %v1929, %v1925
  %v2019 = vpack.c.bf16 %v1937, %v1933
  %v2020 = vpack.c.bf16 %v1939, %v1935
  %v2021 = vpack.c.bf16 %v1947, %v1943
  %v2022 = vpack.c.bf16 %v1949, %v1945
  %v2023 = vpack.c.bf16 %v1957, %v1953
  %v2024 = vpack.c.bf16 %v1959, %v1955
  %v2025 = vpack.c.bf16 %v1967, %v1963
  %v2026 = vpack.c.bf16 %v1969, %v1965
  %v2027 = vpack.c.bf16 %v1977, %v1973
  %v2028 = vpack.c.bf16 %v1979, %v1975
  %v2029 = vpack.c.bf16 %v1987, %v1983
  %v2030 = vpack.c.bf16 %v1989, %v1985
  %v2031 = vpack.c.bf16 %v1997, %v1993
  %v2032 = vpack.c.bf16 %v1999, %v1995
  %s2033 = scalar_lea.vmem %s4, 3
  %v2034 = vld [vmem:[%s2033] ss:$8 sm:$0x3]
  %v2036 = vlaneseq
  %v2037 = vshrl.u32 %v2036, 7
  %v2038 = vsub.s32 0, %v2037
  %v2039 = vrot.slane %v2034, %v2038
  %v2040 = vlaneseq
  %v2041 = vshrl.u32 %v2040, 7
  %v2042 = vsub.s32 1, %v2041
  %v2043 = vrot.slane %v2034, %v2042
  %2046 = vmatprep.subr.bf16.mxu0 %v2016
  %2047 = vmatpush1.bf16.msra.mxu0 %v2015
  %2048 = vmatprep.subr.bf16.mxu0 %v2014
  %2049 = vmatpush1.bf16.msra.mxu0 %v2013
  %2050 = vmatprep.subr.bf16.mxu0 %v2012
  %2051 = vmatpush1.bf16.msra.mxu0 %v2011
  %2052 = vmatprep.subr.bf16.mxu0 %v2010
  %2053 = vmatpush1.bf16.msra.mxu0 %v2009
  %2054 = vmatprep.subr.bf16.mxu0 %v2008
  %2055 = vmatpush1.bf16.msra.mxu0 %v2007
  %2056 = vmatprep.subr.bf16.mxu0 %v2006
  %2057 = vmatpush1.bf16.msra.mxu0 %v2005
  %2058 = vmatprep.subr.bf16.mxu0 %v2004
  %2059 = vmatpush1.bf16.msra.mxu0 %v2003
  %2060 = vmatprep.subr.bf16.mxu0 %v2002
  %2061 = vmatpush1.bf16.msra.mxu0 %v2001
  %2062 = vmatprep.subr.bf16.mxu0 %v2032
  %2063 = vmatpush2.bf16.msra.mxu0 %v2031
  %2064 = vmatprep.subr.bf16.mxu0 %v2030
  %2065 = vmatpush2.bf16.msra.mxu0 %v2029
  %2066 = vmatprep.subr.bf16.mxu0 %v2028
  %2067 = vmatpush2.bf16.msra.mxu0 %v2027
  %2068 = vmatprep.subr.bf16.mxu0 %v2026
  %2069 = vmatpush2.bf16.msra.mxu0 %v2025
  %2070 = vmatprep.subr.bf16.mxu0 %v2024
  %2071 = vmatpush2.bf16.msra.mxu0 %v2023
  %2072 = vmatprep.subr.bf16.mxu0 %v2022
  %2073 = vmatpush2.bf16.msra.mxu0 %v2021
  %2074 = vmatprep.subr.bf16.mxu0 %v2020
  %2075 = vmatpush2.bf16.msra.mxu0 %v2019
  %2076 = vmatprep.subr.bf16.mxu0 %v2018
  %2077 = vmatpush2.bf16.msra.mxu0 %v2017
  %2078 = vmatprep.mubr.bf16.mxu0 %v520
  %2079 = vmatmul.mubr.bf16.gmra.mxu0 %v519
  %v2080 = vpop.f32.mrf.mxu0
  %v2081 = vadd.f32 %v2039, %v2080
  %v2082 = vpop.f32.mrf.mxu0
  %v2083 = vadd.f32 %v2043, %v2082
  %v2084 = vpop.f32.mrf.mxu0
  %v2085 = vadd.f32 %v2039, %v2084
  %v2086 = vpop.f32.mrf.mxu0
  %v2087 = vadd.f32 %v2043, %v2086
  %2088 = vmatprep.mubr.bf16.mxu0 %v522
  %2089 = vmatmul.mubr.bf16.gmra.mxu0 %v521
  %v2090 = vpop.f32.mrf.mxu0
  %v2091 = vadd.f32 %v2039, %v2090
  %v2092 = vpop.f32.mrf.mxu0
  %v2093 = vadd.f32 %v2043, %v2092
  %v2094 = vpop.f32.mrf.mxu0
  %v2095 = vadd.f32 %v2039, %v2094
  %v2096 = vpop.f32.mrf.mxu0
  %v2097 = vadd.f32 %v2043, %v2096
  %2098 = vmatprep.mubr.bf16.mxu0 %v524
  %2099 = vmatmul.mubr.bf16.gmra.mxu0 %v523
  %v2100 = vpop.f32.mrf.mxu0
  %v2101 = vadd.f32 %v2039, %v2100
  %v2102 = vpop.f32.mrf.mxu0
  %v2103 = vadd.f32 %v2043, %v2102
  %v2104 = vpop.f32.mrf.mxu0
  %v2105 = vadd.f32 %v2039, %v2104
  %v2106 = vpop.f32.mrf.mxu0
  %v2107 = vadd.f32 %v2043, %v2106
  %2108 = vmatprep.mubr.bf16.mxu0 %v526
  %2109 = vmatmul.mubr.bf16.gmra.mxu0 %v525
  %v2110 = vpop.f32.mrf.mxu0
  %v2111 = vadd.f32 %v2039, %v2110
  %v2112 = vpop.f32.mrf.mxu0
  %v2113 = vadd.f32 %v2043, %v2112
  %v2114 = vpop.f32.mrf.mxu0
  %v2115 = vadd.f32 %v2039, %v2114
  %v2116 = vpop.f32.mrf.mxu0
  %v2117 = vadd.f32 %v2043, %v2116
  %2118 = vmatprep.mubr.bf16.mxu0 %v528
  %2119 = vmatmul.mubr.bf16.gmra.mxu0 %v527
  %v2120 = vpop.f32.mrf.mxu0
  %v2121 = vadd.f32 %v2039, %v2120
  %v2122 = vpop.f32.mrf.mxu0
  %v2123 = vadd.f32 %v2043, %v2122
  %v2124 = vpop.f32.mrf.mxu0
  %v2125 = vadd.f32 %v2039, %v2124
  %v2126 = vpop.f32.mrf.mxu0
  %v2127 = vadd.f32 %v2043, %v2126
  %2128 = vmatprep.mubr.bf16.mxu0 %v530
  %2129 = vmatmul.mubr.bf16.gmra.mxu0 %v529
  %v2130 = vpop.f32.mrf.mxu0
  %v2131 = vadd.f32 %v2039, %v2130
  %v2132 = vpop.f32.mrf.mxu0
  %v2133 = vadd.f32 %v2043, %v2132
  %v2134 = vpop.f32.mrf.mxu0
  %v2135 = vadd.f32 %v2039, %v2134
  %v2136 = vpop.f32.mrf.mxu0
  %v2137 = vadd.f32 %v2043, %v2136
  %2138 = vmatprep.mubr.bf16.mxu0 %v532
  %2139 = vmatmul.mubr.bf16.gmra.mxu0 %v531
  %v2140 = vpop.f32.mrf.mxu0
  %v2141 = vadd.f32 %v2039, %v2140
  %v2142 = vpop.f32.mrf.mxu0
  %v2143 = vadd.f32 %v2043, %v2142
  %v2144 = vpop.f32.mrf.mxu0
  %v2145 = vadd.f32 %v2039, %v2144
  %v2146 = vpop.f32.mrf.mxu0
  %v2147 = vadd.f32 %v2043, %v2146
  %2148 = vmatprep.mubr.bf16.mxu0 %v534
  %2149 = vmatmul.mubr.bf16.gmra.mxu0 %v533
  %v2150 = vpop.f32.mrf.mxu0
  %v2151 = vadd.f32 %v2039, %v2150
  %v2152 = vpop.f32.mrf.mxu0
  %v2153 = vadd.f32 %v2043, %v2152
  %v2154 = vpop.f32.mrf.mxu0
  %v2155 = vadd.f32 %v2039, %v2154
  %v2156 = vpop.f32.mrf.mxu0
  %v2157 = vadd.f32 %v2043, %v2156
  %2158 = vmatprep.mubr.bf16.mxu0 %v536
  %2159 = vmatmul.mubr.bf16.gmra.mxu0 %v535
  %v2160 = vpop.f32.mrf.mxu0
  %v2161 = vadd.f32 %v2039, %v2160
  %v2162 = vpop.f32.mrf.mxu0
  %v2163 = vadd.f32 %v2043, %v2162
  %v2164 = vpop.f32.mrf.mxu0
  %v2165 = vadd.f32 %v2039, %v2164
  %v2166 = vpop.f32.mrf.mxu0
  %v2167 = vadd.f32 %v2043, %v2166
  %2168 = vmatprep.mubr.bf16.mxu0 %v538
  %2169 = vmatmul.mubr.bf16.gmra.mxu0 %v537
  %v2170 = vpop.f32.mrf.mxu0
  %v2171 = vadd.f32 %v2039, %v2170
  %v2172 = vpop.f32.mrf.mxu0
  %v2173 = vadd.f32 %v2043, %v2172
  %v2174 = vpop.f32.mrf.mxu0
  %v2175 = vadd.f32 %v2039, %v2174
  %v2176 = vpop.f32.mrf.mxu0
  %v2177 = vadd.f32 %v2043, %v2176
  %2178 = vmatprep.mubr.bf16.mxu0 %v540
  %2179 = vmatmul.mubr.bf16.gmra.mxu0 %v539
  %v2180 = vpop.f32.mrf.mxu0
  %v2181 = vadd.f32 %v2039, %v2180
  %v2182 = vpop.f32.mrf.mxu0
  %v2183 = vadd.f32 %v2043, %v2182
  %v2184 = vpop.f32.mrf.mxu0
  %v2185 = vadd.f32 %v2039, %v2184
  %v2186 = vpop.f32.mrf.mxu0
  %v2187 = vadd.f32 %v2043, %v2186
  %2188 = vmatprep.mubr.bf16.mxu0 %v542
  %2189 = vmatmul.mubr.bf16.gmra.mxu0 %v541
  %v2190 = vpop.f32.mrf.mxu0
  %v2191 = vadd.f32 %v2039, %v2190
  %v2192 = vpop.f32.mrf.mxu0
  %v2193 = vadd.f32 %v2043, %v2192
  %v2194 = vpop.f32.mrf.mxu0
  %v2195 = vadd.f32 %v2039, %v2194
  %v2196 = vpop.f32.mrf.mxu0
  %v2197 = vadd.f32 %v2043, %v2196
  %2198 = vmatprep.mubr.bf16.mxu0 %v544
  %2199 = vmatmul.mubr.bf16.gmra.mxu0 %v543
  %v2200 = vpop.f32.mrf.mxu0
  %v2201 = vadd.f32 %v2039, %v2200
  %v2202 = vpop.f32.mrf.mxu0
  %v2203 = vadd.f32 %v2043, %v2202
  %v2204 = vpop.f32.mrf.mxu0
  %v2205 = vadd.f32 %v2039, %v2204
  %v2206 = vpop.f32.mrf.mxu0
  %v2207 = vadd.f32 %v2043, %v2206
  %2208 = vmatprep.mubr.bf16.mxu0 %v546
  %2209 = vmatmul.mubr.bf16.gmra.mxu0 %v545
  %v2210 = vpop.f32.mrf.mxu0
  %v2211 = vadd.f32 %v2039, %v2210
  %v2212 = vpop.f32.mrf.mxu0
  %v2213 = vadd.f32 %v2043, %v2212
  %v2214 = vpop.f32.mrf.mxu0
  %v2215 = vadd.f32 %v2039, %v2214
  %v2216 = vpop.f32.mrf.mxu0
  %v2217 = vadd.f32 %v2043, %v2216
  %2218 = vmatprep.mubr.bf16.mxu0 %v548
  %2219 = vmatmul.mubr.bf16.gmra.mxu0 %v547
  %v2220 = vpop.f32.mrf.mxu0
  %v2221 = vadd.f32 %v2039, %v2220
  %v2222 = vpop.f32.mrf.mxu0
  %v2223 = vadd.f32 %v2043, %v2222
  %v2224 = vpop.f32.mrf.mxu0
  %v2225 = vadd.f32 %v2039, %v2224
  %v2226 = vpop.f32.mrf.mxu0
  %v2227 = vadd.f32 %v2043, %v2226
  %2228 = vmatprep.mubr.bf16.mxu0 %v550
  %2229 = vmatmul.mubr.bf16.gmra.mxu0 %v549
  %v2230 = vpop.f32.mrf.mxu0
  %v2231 = vadd.f32 %v2039, %v2230
  %v2232 = vpop.f32.mrf.mxu0
  %v2233 = vadd.f32 %v2043, %v2232
  %v2234 = vpop.f32.mrf.mxu0
  %v2235 = vadd.f32 %v2039, %v2234
  %v2236 = vpop.f32.mrf.mxu0
  %v2237 = vadd.f32 %v2043, %v2236
  %2238 = vdwg.mxu0
  %v2239 = vmax.f32 %v2081, 0.0
  %v2240 = vmax.f32 %v2083, 0.0
  %v2241 = vmax.f32 %v2085, 0.0
  %v2242 = vmax.f32 %v2087, 0.0
  %v2243 = vmax.f32 %v2091, 0.0
  %v2244 = vmax.f32 %v2093, 0.0
  %v2245 = vmax.f32 %v2095, 0.0
  %v2246 = vmax.f32 %v2097, 0.0
  %v2247 = vmax.f32 %v2101, 0.0
  %v2248 = vmax.f32 %v2103, 0.0
  %v2249 = vmax.f32 %v2105, 0.0
  %v2250 = vmax.f32 %v2107, 0.0
  %v2251 = vmax.f32 %v2111, 0.0
  %v2252 = vmax.f32 %v2113, 0.0
  %v2253 = vmax.f32 %v2115, 0.0
  %v2254 = vmax.f32 %v2117, 0.0
  %v2255 = vmax.f32 %v2121, 0.0
  %v2256 = vmax.f32 %v2123, 0.0
  %v2257 = vmax.f32 %v2125, 0.0
  %v2258 = vmax.f32 %v2127, 0.0
  %v2259 = vmax.f32 %v2131, 0.0
  %v2260 = vmax.f32 %v2133, 0.0
  %v2261 = vmax.f32 %v2135, 0.0
  %v2262 = vmax.f32 %v2137, 0.0
  %v2263 = vmax.f32 %v2141, 0.0
  %v2264 = vmax.f32 %v2143, 0.0
  %v2265 = vmax.f32 %v2145, 0.0
  %v2266 = vmax.f32 %v2147, 0.0
  %v2267 = vmax.f32 %v2151, 0.0
  %v2268 = vmax.f32 %v2153, 0.0
  %v2269 = vmax.f32 %v2155, 0.0
  %v2270 = vmax.f32 %v2157, 0.0
  %v2271 = vmax.f32 %v2161, 0.0
  %v2272 = vmax.f32 %v2163, 0.0
  %v2273 = vmax.f32 %v2165, 0.0
  %v2274 = vmax.f32 %v2167, 0.0
  %v2275 = vmax.f32 %v2171, 0.0
  %v2276 = vmax.f32 %v2173, 0.0
  %v2277 = vmax.f32 %v2175, 0.0
  %v2278 = vmax.f32 %v2177, 0.0
  %v2279 = vmax.f32 %v2181, 0.0
  %v2280 = vmax.f32 %v2183, 0.0
  %v2281 = vmax.f32 %v2185, 0.0
  %v2282 = vmax.f32 %v2187, 0.0
  %v2283 = vmax.f32 %v2191, 0.0
  %v2284 = vmax.f32 %v2193, 0.0
  %v2285 = vmax.f32 %v2195, 0.0
  %v2286 = vmax.f32 %v2197, 0.0
  %v2287 = vmax.f32 %v2201, 0.0
  %v2288 = vmax.f32 %v2203, 0.0
  %v2289 = vmax.f32 %v2205, 0.0
  %v2290 = vmax.f32 %v2207, 0.0
  %v2291 = vmax.f32 %v2211, 0.0
  %v2292 = vmax.f32 %v2213, 0.0
  %v2293 = vmax.f32 %v2215, 0.0
  %v2294 = vmax.f32 %v2217, 0.0
  %v2295 = vmax.f32 %v2221, 0.0
  %v2296 = vmax.f32 %v2223, 0.0
  %v2297 = vmax.f32 %v2225, 0.0
  %v2298 = vmax.f32 %v2227, 0.0
  %v2299 = vmax.f32 %v2231, 0.0
  %v2300 = vmax.f32 %v2233, 0.0
  %v2301 = vmax.f32 %v2235, 0.0
  %v2302 = vmax.f32 %v2237, 0.0
  %v2303 = vpack.c.bf16 %v2241, %v2239
  %v2304 = vpack.c.bf16 %v2242, %v2240
  %v2305 = vpack.c.bf16 %v2245, %v2243
  %v2306 = vpack.c.bf16 %v2246, %v2244
  %v2307 = vpack.c.bf16 %v2249, %v2247
  %v2308 = vpack.c.bf16 %v2250, %v2248
  %v2309 = vpack.c.bf16 %v2253, %v2251
  %v2310 = vpack.c.bf16 %v2254, %v2252
  %v2311 = vpack.c.bf16 %v2257, %v2255
  %v2312 = vpack.c.bf16 %v2258, %v2256
  %v2313 = vpack.c.bf16 %v2261, %v2259
  %v2314 = vpack.c.bf16 %v2262, %v2260
  %v2315 = vpack.c.bf16 %v2265, %v2263
  %v2316 = vpack.c.bf16 %v2266, %v2264
  %v2317 = vpack.c.bf16 %v2269, %v2267
  %v2318 = vpack.c.bf16 %v2270, %v2268
  %v2319 = vpack.c.bf16 %v2273, %v2271
  %v2320 = vpack.c.bf16 %v2274, %v2272
  %v2321 = vpack.c.bf16 %v2277, %v2275
  %v2322 = vpack.c.bf16 %v2278, %v2276
  %v2323 = vpack.c.bf16 %v2281, %v2279
  %v2324 = vpack.c.bf16 %v2282, %v2280
  %v2325 = vpack.c.bf16 %v2285, %v2283
  %v2326 = vpack.c.bf16 %v2286, %v2284
  %v2327 = vpack.c.bf16 %v2289, %v2287
  %v2328 = vpack.c.bf16 %v2290, %v2288
  %v2329 = vpack.c.bf16 %v2293, %v2291
  %v2330 = vpack.c.bf16 %v2294, %v2292
  %v2331 = vpack.c.bf16 %v2297, %v2295
  %v2332 = vpack.c.bf16 %v2298, %v2296
  %v2333 = vpack.c.bf16 %v2301, %v2299
  %v2334 = vpack.c.bf16 %v2302, %v2300
  %v2335 = vld [vmem:[%s2] sm:$0xff]
  %v2337 = vunpack.c.l.b16 %v2335
  %v2338 = vunpack.c.h.b16 %v2335
  %v2339 = vpack.c.b16 %v2337, %v2337
  %v2340 = vpack.c.b16 %v2338, %v2338
  %2343 = vmatprep.subr.bf16.mxu0 %v2318
  %2344 = vmatpush1.bf16.msra.mxu0 %v2317
  %2345 = vmatprep.subr.bf16.mxu0 %v2316
  %2346 = vmatpush1.bf16.msra.mxu0 %v2315
  %2347 = vmatprep.subr.bf16.mxu0 %v2314
  %2348 = vmatpush1.bf16.msra.mxu0 %v2313
  %2349 = vmatprep.subr.bf16.mxu0 %v2312
  %2350 = vmatpush1.bf16.msra.mxu0 %v2311
  %2351 = vmatprep.subr.bf16.mxu0 %v2310
  %2352 = vmatpush1.bf16.msra.mxu0 %v2309
  %2353 = vmatprep.subr.bf16.mxu0 %v2308
  %2354 = vmatpush1.bf16.msra.mxu0 %v2307
  %2355 = vmatprep.subr.bf16.mxu0 %v2306
  %2356 = vmatpush1.bf16.msra.mxu0 %v2305
  %2357 = vmatprep.subr.bf16.mxu0 %v2304
  %2358 = vmatpush1.bf16.msra.mxu0 %v2303
  %2359 = vmatprep.subr.bf16.mxu0 %v2334
  %2360 = vmatpush2.bf16.msra.mxu0 %v2333
  %2361 = vmatprep.subr.bf16.mxu0 %v2332
  %2362 = vmatpush2.bf16.msra.mxu0 %v2331
  %2363 = vmatprep.subr.bf16.mxu0 %v2330
  %2364 = vmatpush2.bf16.msra.mxu0 %v2329
  %2365 = vmatprep.subr.bf16.mxu0 %v2328
  %2366 = vmatpush2.bf16.msra.mxu0 %v2327
  %2367 = vmatprep.subr.bf16.mxu0 %v2326
  %2368 = vmatpush2.bf16.msra.mxu0 %v2325
  %2369 = vmatprep.subr.bf16.mxu0 %v2324
  %2370 = vmatpush2.bf16.msra.mxu0 %v2323
  %2371 = vmatprep.subr.bf16.mxu0 %v2322
  %2372 = vmatpush2.bf16.msra.mxu0 %v2321
  %2373 = vmatprep.subr.bf16.mxu0 %v2320
  %2374 = vmatpush2.bf16.msra.mxu0 %v2319
  %2375 = vmatprep.mubr.bf16.mxu0 %v2340
  %2376 = vmatmul.mubr.bf16.gmra.mxu0 %v2339
  %v2377 = vpop.f32.mrf.mxu0
  %v2378 = vadd.f32 0.0, %v2377
  %v2379 = vpop.f32.mrf.mxu0
  %v2380 = vadd.f32 0.0, %v2379
  %v2381 = vpop.f32.mrf.mxu0
  %v2382 = vpop.f32.mrf.mxu0
  %2383 = vdwg.mxu0
  %v2384 = vpack.c.bf16 %v2378, %v2378
  %v2385 = vpack.c.bf16 %v2380, %v2380
  %v2386 = vld [vmem:[%s3 + $0x160] sm:$0xf]
  %v2387 = vld [vmem:[%s3 + $0x168] sm:$0xf]
  %v2388 = vld [vmem:[%s3 + $0x170] sm:$0xf]
  %v2389 = vld [vmem:[%s3 + $0x178] sm:$0xf]
  %v2390 = vld [vmem:[%s3 + $0x180] sm:$0xf]
  %v2391 = vld [vmem:[%s3 + $0x188] sm:$0xf]
  %v2392 = vld [vmem:[%s3 + $0x190] sm:$0xf]
  %v2393 = vld [vmem:[%s3 + $0x198] sm:$0xf]
  %v2394 = vld [vmem:[%s3 + $0x1a0] sm:$0xf]
  %v2395 = vld [vmem:[%s3 + $0x1a8] sm:$0xf]
  %v2396 = vld [vmem:[%s3 + $0x1b0] sm:$0xf]
  %v2397 = vld [vmem:[%s3 + $0x1b8] sm:$0xf]
  %v2398 = vld [vmem:[%s3 + $0x1c0] sm:$0xf]
  %v2399 = vld [vmem:[%s3 + $0x1c8] sm:$0xf]
  %v2400 = vld [vmem:[%s3 + $0x1d0] sm:$0xf]
  %v2401 = vld [vmem:[%s3 + $0x1d8] sm:$0xf]
  %v2402 = vld [vmem:[%s3 + $0x1e0] sm:$0xf]
  %v2403 = vld [vmem:[%s3 + $0x1e8] sm:$0xf]
  %v2404 = vld [vmem:[%s3 + $0x1f0] sm:$0xf]
  %v2405 = vld [vmem:[%s3 + $0x1f8] sm:$0xf]
  %v2406 = vld [vmem:[%s3 + $0x200] sm:$0xf]
  %v2407 = vld [vmem:[%s3 + $0x208] sm:$0xf]
  %v2408 = vld [vmem:[%s3 + $0x210] sm:$0xf]
  %v2409 = vld [vmem:[%s3 + $0x218] sm:$0xf]
  %v2410 = vld [vmem:[%s3 + $0x220] sm:$0xf]
  %v2411 = vld [vmem:[%s3 + $0x228] sm:$0xf]
  %v2412 = vld [vmem:[%s3 + $0x230] sm:$0xf]
  %v2413 = vld [vmem:[%s3 + $0x238] sm:$0xf]
  %v2414 = vld [vmem:[%s3 + $0x240] sm:$0xf]
  %v2415 = vld [vmem:[%s3 + $0x248] sm:$0xf]
  %v2416 = vld [vmem:[%s3 + $0x250] sm:$0xf]
  %v2417 = vld [vmem:[%s3 + $0x258] sm:$0xf]
  %v2418 = vld [vmem:[%s4 + $0x4] ss:$0 sm:$0xff]
  %v2451 = vunpack.c.l.b16 %v2386
  %v2452 = vunpack.c.l.b16 %v2387
  %v2453 = vunpack.c.l.b16 %v2388
  %v2454 = vunpack.c.l.b16 %v2389
  %v2455 = vunpack.c.l.b16 %v2390
  %v2456 = vunpack.c.l.b16 %v2391
  %v2457 = vunpack.c.l.b16 %v2392
  %v2458 = vunpack.c.l.b16 %v2393
  %v2459 = vunpack.c.l.b16 %v2394
  %v2460 = vunpack.c.l.b16 %v2395
  %v2461 = vunpack.c.l.b16 %v2396
  %v2462 = vunpack.c.l.b16 %v2397
  %v2463 = vunpack.c.l.b16 %v2398
  %v2464 = vunpack.c.l.b16 %v2399
  %v2465 = vunpack.c.l.b16 %v2400
  %v2466 = vunpack.c.l.b16 %v2401
  %v2467 = vunpack.c.l.b16 %v2402
  %v2468 = vunpack.c.l.b16 %v2403
  %v2469 = vunpack.c.l.b16 %v2404
  %v2470 = vunpack.c.l.b16 %v2405
  %v2471 = vunpack.c.l.b16 %v2406
  %v2472 = vunpack.c.l.b16 %v2407
  %v2473 = vunpack.c.l.b16 %v2408
  %v2474 = vunpack.c.l.b16 %v2409
  %v2475 = vunpack.c.l.b16 %v2410
  %v2476 = vunpack.c.l.b16 %v2411
  %v2477 = vunpack.c.l.b16 %v2412
  %v2478 = vunpack.c.l.b16 %v2413
  %v2479 = vunpack.c.l.b16 %v2414
  %v2480 = vunpack.c.l.b16 %v2415
  %v2481 = vunpack.c.l.b16 %v2416
  %v2482 = vunpack.c.l.b16 %v2417
  %v2483 = vpack.c.b16 %v2452, %v2451
  %v2484 = vpack.c.b16 %v2454, %v2453
  %v2485 = vpack.c.b16 %v2456, %v2455
  %v2486 = vpack.c.b16 %v2458, %v2457
  %v2487 = vpack.c.b16 %v2460, %v2459
  %v2488 = vpack.c.b16 %v2462, %v2461
  %v2489 = vpack.c.b16 %v2464, %v2463
  %v2490 = vpack.c.b16 %v2466, %v2465
  %v2491 = vpack.c.b16 %v2468, %v2467
  %v2492 = vpack.c.b16 %v2470, %v2469
  %v2493 = vpack.c.b16 %v2472, %v2471
  %v2494 = vpack.c.b16 %v2474, %v2473
  %v2495 = vpack.c.b16 %v2476, %v2475
  %v2496 = vpack.c.b16 %v2478, %v2477
  %v2497 = vpack.c.b16 %v2480, %v2479
  %v2498 = vpack.c.b16 %v2482, %v2481
  %2515 = vmatprep.subr.bf16.mxu0 0
  %2516 = vmatpush1.bf16.msra.mxu0 %v2490
  %2517 = vmatprep.subr.bf16.mxu0 0
  %2518 = vmatpush1.bf16.msra.mxu0 %v2489
  %2519 = vmatprep.subr.bf16.mxu0 0
  %2520 = vmatpush1.bf16.msra.mxu0 %v2488
  %2521 = vmatprep.subr.bf16.mxu0 0
  %2522 = vmatpush1.bf16.msra.mxu0 %v2487
  %2523 = vmatprep.subr.bf16.mxu0 0
  %2524 = vmatpush1.bf16.msra.mxu0 %v2486
  %2525 = vmatprep.subr.bf16.mxu0 0
  %2526 = vmatpush1.bf16.msra.mxu0 %v2485
  %2527 = vmatprep.subr.bf16.mxu0 0
  %2528 = vmatpush1.bf16.msra.mxu0 %v2484
  %2529 = vmatprep.subr.bf16.mxu0 0
  %2530 = vmatpush1.bf16.msra.mxu0 %v2483
  %2531 = vmatprep.subr.bf16.mxu0 0
  %2532 = vmatpush2.bf16.msra.mxu0 %v2498
  %2533 = vmatprep.subr.bf16.mxu0 0
  %2534 = vmatpush2.bf16.msra.mxu0 %v2497
  %2535 = vmatprep.subr.bf16.mxu0 0
  %2536 = vmatpush2.bf16.msra.mxu0 %v2496
  %2537 = vmatprep.subr.bf16.mxu0 0
  %2538 = vmatpush2.bf16.msra.mxu0 %v2495
  %2539 = vmatprep.subr.bf16.mxu0 0
  %2540 = vmatpush2.bf16.msra.mxu0 %v2494
  %2541 = vmatprep.subr.bf16.mxu0 0
  %2542 = vmatpush2.bf16.msra.mxu0 %v2493
  %2543 = vmatprep.subr.bf16.mxu0 0
  %2544 = vmatpush2.bf16.msra.mxu0 %v2492
  %2545 = vmatprep.subr.bf16.mxu0 0
  %2546 = vmatpush2.bf16.msra.mxu0 %v2491
  %2547 = vmatprep.mubr.bf16.mxu0 %v2385
  %2548 = vmatmul.mubr.bf16.gmra.mxu0 %v2384
  %v2549 = vpop.f32.mrf.mxu0
  %v2550 = vadd.f32 %v2418, %v2549
  %v2551 = vpop.f32.mrf.mxu0
  %v2552 = vpop.f32.mrf.mxu0
  %v2553 = vpop.f32.mrf.mxu0
  %2554 = vdwg.mxu0
  %v2555 = vmax.f32 %v2550, 0.0
  %v2556 = vpack.c.bf16 %v2555, %v2555
  %v2557 = vld [vmem:[%s3 + $0x260] sm:$0xf]
  %v2558 = vld [vmem:[%s3 + $0x268] sm:$0xf]
  %v2559 = vld [vmem:[%s3 + $0x270] sm:$0xf]
  %v2560 = vld [vmem:[%s3 + $0x278] sm:$0xf]
  %v2561 = vld [vmem:[%s3 + $0x280] sm:$0xf]
  %v2562 = vld [vmem:[%s3 + $0x288] sm:$0xf]
  %v2563 = vld [vmem:[%s3 + $0x290] sm:$0xf]
  %v2564 = vld [vmem:[%s3 + $0x298] sm:$0xf]
  %v2565 = vld [vmem:[%s3 + $0x2a0] sm:$0xf]
  %v2566 = vld [vmem:[%s3 + $0x2a8] sm:$0xf]
  %v2567 = vld [vmem:[%s3 + $0x2b0] sm:$0xf]
  %v2568 = vld [vmem:[%s3 + $0x2b8] sm:$0xf]
  %v2569 = vld [vmem:[%s3 + $0x2c0] sm:$0xf]
  %v2570 = vld [vmem:[%s3 + $0x2c8] sm:$0xf]
  %v2571 = vld [vmem:[%s3 + $0x2d0] sm:$0xf]
  %v2572 = vld [vmem:[%s3 + $0x2d8] sm:$0xf]
  %v2573 = vld [vmem:[%s4 + $0x5] ss:$0 sm:$0xff]
  %v2590 = vunpack.c.l.b16 %v2557
  %v2591 = vunpack.c.l.b16 %v2558
  %v2592 = vunpack.c.l.b16 %v2559
  %v2593 = vunpack.c.l.b16 %v2560
  %v2594 = vunpack.c.l.b16 %v2561
  %v2595 = vunpack.c.l.b16 %v2562
  %v2596 = vunpack.c.l.b16 %v2563
  %v2597 = vunpack.c.l.b16 %v2564
  %v2598 = vunpack.c.l.b16 %v2565
  %v2599 = vunpack.c.l.b16 %v2566
  %v2600 = vunpack.c.l.b16 %v2567
  %v2601 = vunpack.c.l.b16 %v2568
  %v2602 = vunpack.c.l.b16 %v2569
  %v2603 = vunpack.c.l.b16 %v2570
  %v2604 = vunpack.c.l.b16 %v2571
  %v2605 = vunpack.c.l.b16 %v2572
  %v2606 = vpack.c.b16 %v2591, %v2590
  %v2607 = vpack.c.b16 %v2593, %v2592
  %v2608 = vpack.c.b16 %v2595, %v2594
  %v2609 = vpack.c.b16 %v2597, %v2596
  %v2610 = vpack.c.b16 %v2599, %v2598
  %v2611 = vpack.c.b16 %v2601, %v2600
  %v2612 = vpack.c.b16 %v2603, %v2602
  %v2613 = vpack.c.b16 %v2605, %v2604
  %2622 = vmatprep.subr.bf16.mxu0 0
  %2623 = vmatpush1.bf16.msra.mxu0 %v2613
  %2624 = vmatprep.subr.bf16.mxu0 0
  %2625 = vmatpush1.bf16.msra.mxu0 %v2612
  %2626 = vmatprep.subr.bf16.mxu0 0
  %2627 = vmatpush1.bf16.msra.mxu0 %v2611
  %2628 = vmatprep.subr.bf16.mxu0 0
  %2629 = vmatpush1.bf16.msra.mxu0 %v2610
  %2630 = vmatprep.subr.bf16.mxu0 0
  %2631 = vmatpush1.bf16.msra.mxu0 %v2609
  %2632 = vmatprep.subr.bf16.mxu0 0
  %2633 = vmatpush1.bf16.msra.mxu0 %v2608
  %2634 = vmatprep.subr.bf16.mxu0 0
  %2635 = vmatpush1.bf16.msra.mxu0 %v2607
  %2636 = vmatprep.subr.bf16.mxu0 0
  %2637 = vmatpush1.bf16.msra.mxu0 %v2606
  %2638 = vmatprep.subr.bf16.mxu0 0
  %2639 = vmatpush2.bf16.msra.mxu0 0
  %2640 = vmatprep.subr.bf16.mxu0 0
  %2641 = vmatpush2.bf16.msra.mxu0 0
  %2642 = vmatprep.subr.bf16.mxu0 0
  %2643 = vmatpush2.bf16.msra.mxu0 0
  %2644 = vmatprep.subr.bf16.mxu0 0
  %2645 = vmatpush2.bf16.msra.mxu0 0
  %2646 = vmatprep.subr.bf16.mxu0 0
  %2647 = vmatpush2.bf16.msra.mxu0 0
  %2648 = vmatprep.subr.bf16.mxu0 0
  %2649 = vmatpush2.bf16.msra.mxu0 0
  %2650 = vmatprep.subr.bf16.mxu0 0
  %2651 = vmatpush2.bf16.msra.mxu0 0
  %2652 = vmatprep.subr.bf16.mxu0 0
  %2653 = vmatpush2.bf16.msra.mxu0 0
  %2654 = vmatprep.mubr.bf16.mxu0 0
  %2655 = vmatmul.mubr.bf16.gmra.mxu0 %v2556
  %v2656 = vpop.f32.mrf.mxu0
  %v2657 = vadd.f32 %v2573, %v2656
  %v2658 = vpop.f32.mrf.mxu0
  %v2659 = vpop.f32.mrf.mxu0
  %v2660 = vpop.f32.mrf.mxu0
  %2661 = vdwg.mxu0
  %v2662 = vlaneseq
  %v2663 = vand.u32 %v2662, 127
  %vm2664 = vcmp.lt.s32.totalorder %v2663, 4
  %v2665 = vsel %vm2664, %v2657, -1e+30
  %2666 = vmax.xlane.f32.xlu0 %v2665
  %v2667 = vpop.xlane.xlu0 %2666
  %v2668 = vsub.f32 %v2665, %v2667
  %v2669 = vmul.f32 %v2668, 1.442695
  %v2670 = vpow.pop %v2669
  %2671 = vadd.xlane.f32.xlu0 %v2670
  %v2672 = vpop.xlane.xlu0 %2671
  %v2673 = vlog2.pop %v2672
  %v2674 = vmul.f32 %v2673, 0.6931472
  %v2675 = vsub.f32 %v2668, %v2674
  %2676 = vst [vmem:[%s5] sm:$0xff] %v2675
  // Predicated region
  $region22: #{net_forward.1} parent=0 // pred_check
    _
  $region23: #{net_forward.1} parent=0 // pred_check_branch
    %2678 = sbr.rel (0) target = $region25
  $region24: #{net_forward.1} parent=0 // pred_region
    _
  $region25: #{net_forward.1} parent=0 // pred_fallthru
    _
  // Predicated region
  $region26: #{net_forward.1} parent=0 // pred_check
    _
  $region27: #{net_forward.1} parent=0 // pred_check_branch
    %2680 = sbr.rel (0) target = $region29
  $region28: #{net_forward.1} parent=0 // pred_region
    _
  $region29: #{net_forward.1} parent=0 // pred_fallthru
    _

</llo_original>
